<compile_context>
chip_gen: v6e
topology: v6e:2x2x1
jax: 0.10.0
libtpu: 0.0.40
codegen_flags: <defaults>
</compile_context>

<pallas_src>
import math
import functools

import jax
import jax.numpy as jnp
from jax.experimental import pallas as pl
from jax.experimental.pallas import tpu as pltpu


def _transformer_block_kernel(
    x_ref,
    ln1_g_ref, ln1_b_ref,
    wqkv_ref, bqkv_ref,          # (E, 3E) bf16 (cols ordered h,[q|k|v],d; Q pre-scaled), (1, 3E) f32
    wo_ref, bo_ref,              # (Bt*H, Dh, E) bf16 (head-major, tiled over Bt), (1, E) f32
    ln2_g_ref, ln2_b_ref,
    w1_ref, b1_ref, w2_ref, b2_ref,
    o_ref,
    *, num_heads: int,
):
    eps = 1e-5
    Bt, S, E = x_ref.shape
    H = num_heads
    Dh = E // H
    R = Bt * S
    BH = Bt * H

    # Flatten (Bt, S, E) -> (Bt*S, E): leading-dim merge only (last two dims kept), free.
    x = x_ref[...].astype(jnp.float32).reshape(R, E)

    # ---- LayerNorm 1 (f32 elementwise) ----
    mu = jnp.mean(x, axis=-1, keepdims=True)
    var = jnp.mean((x - mu) ** 2, axis=-1, keepdims=True)
    x1 = (x - mu) * jax.lax.rsqrt(var + eps) * ln1_g_ref[...] + ln1_b_ref[...]

    # ---- Fused Q|K|V projection: ONE (R, E) @ (E, 3E) MXU matmul ----
    # (bias broadcast hoisted out of any loop; 1/sqrt(Dh) already folded into Q cols/bias)
    qkv = jnp.dot(x1.astype(jnp.bfloat16), wqkv_ref[...],
                  preferred_element_type=jnp.float32) + bqkv_ref[...]        # (R, 3E) f32

    # ---- Head split: static lane slices -> single merged (Bt*H) batch dim ----
    qkv3 = qkv.reshape(Bt, S, 3 * E)                       # leading split, free
    qkv_hm = jnp.stack(
        [qkv3[:, :, h * 3 * Dh:(h + 1) * 3 * Dh] for h in range(H)], axis=1
    ).reshape(BH, S, 3 * Dh)                               # (Bt*H, S, 3*Dh)
    q = qkv_hm[:, :, 0 * Dh:1 * Dh]                        # (BH, S, Dh), pre-scaled
    k = qkv_hm[:, :, 1 * Dh:2 * Dh]
    v = qkv_hm[:, :, 2 * Dh:3 * Dh]

    # ---- Attention, batched over (Bt*H); f32 operands (tiny matmuls, skip bf16 packs) ----
    s = jnp.einsum("hqd,hkd->hqk", q, k,
                   preferred_element_type=jnp.float32)     # (BH, S, S)
    s = s - jnp.max(s, axis=-1, keepdims=True)
    p = jnp.exp(s)
    p = p * pl.reciprocal(jnp.sum(p, axis=-1, keepdims=True), approx=True)
    # TODO(synk): attention dropout (p=0.1) omitted — inference-mode identity.

    ah = jnp.einsum("hqk,hkd->hqd", p, v,
                    preferred_element_type=jnp.float32)    # (BH, S, Dh)

    # ---- Output projection (weight matmul -> bf16), head merge via slab sum ----
    ob = jnp.einsum("hqd,hde->hqe", ah.astype(jnp.bfloat16), wo_ref[...],
                    preferred_element_type=jnp.float32)    # (BH, S, E)
    attn = jnp.sum(ob.reshape(Bt, H, S, E), axis=1).reshape(R, E) + bo_ref[...]

    # ---- residual ----
    x2 = attn + x                                          # (R, E), f32

    # ---- LayerNorm 2 ----
    mu2 = jnp.mean(x2, axis=-1, keepdims=True)
    var2 = jnp.mean((x2 - mu2) ** 2, axis=-1, keepdims=True)
    x3 = (x2 - mu2) * jax.lax.rsqrt(var2 + eps) * ln2_g_ref[...] + ln2_b_ref[...]

    # ---- MLP (Linear -> ReLU -> [Dropout] -> Linear -> ReLU -> [Dropout]) ----
    h1 = jnp.dot(x3.astype(jnp.bfloat16), w1_ref[...],
                 preferred_element_type=jnp.float32) + b1_ref[...]
    h1 = jnp.maximum(h1, 0.0)
    h2 = jnp.dot(h1.astype(jnp.bfloat16), w2_ref[...],
                 preferred_element_type=jnp.float32) + b2_ref[...]
    h2 = jnp.maximum(h2, 0.0)
    # TODO(synk): MLP dropouts (p=0.1) omitted — inference-mode identity.

    o_ref[...] = (h2 + x2).reshape(Bt, S, E).astype(o_ref.dtype)
    # NOTE: E=32 < 128 lanes -> masked store; at production E pad to 128 (masked LN stats)
    # for lane-dense unmasked stores.


def _prepare_weights(params, *, num_heads, batch_tile, mm_dtype=jnp.bfloat16):
    """Wrapper-side (plain JAX, free) weight restructuring:
       - single fused (E, 3E) QKV weight, columns ordered (head, q|k|v, d),
         with 1/sqrt(Dh) folded into the Q columns + Q bias
       - head-major output projection tiled over the batch tile (so the kernel's
         output-proj einsum batches over one merged (Bt*H) leading dim)
       - matmul weights cast to bf16; biases / LN params stay f32."""
    E = params["wq"].shape[0]
    H = num_heads
    Dh = E // H
    scale = 1.0 / math.sqrt(Dh)

    def w_heads(w):                       # (E, E) -> (E, H, Dh)
        return w.reshape(E, H, Dh)

    def b_heads(b):                       # (1, E) -> (1, H, Dh)
        return b.reshape(1, H, Dh)

    wqkv = jnp.stack([w_heads(params["wq"] * scale),
                      w_heads(params["wk"]),
                      w_heads(params["wv"])], axis=2)          # (E, H, 3, Dh)
    wqkv = wqkv.reshape(E, 3 * E).astype(mm_dtype)             # (E, 3E)
    bqkv = jnp.stack([b_heads(params["bq"] * scale),
                      b_heads(params["bk"]),
                      b_heads(params["bv"])], axis=2)          # (1, H, 3, Dh)
    bqkv = bqkv.reshape(1, 3 * E).astype(jnp.float32)          # (1, 3E)

    wo_hm = params["wo"].reshape(H, Dh, E).astype(mm_dtype)    # (H, Dh, E)
    wo_hm = jnp.tile(wo_hm, (batch_tile, 1, 1))                # (Bt*H, Dh, E)

    return {
        "ln1_g": params["ln1_g"], "ln1_b": params["ln1_b"],
        "wqkv": wqkv, "bqkv": bqkv,
        "wo": wo_hm, "bo": params["bo"],
        "ln2_g": params["ln2_g"], "ln2_b": params["ln2_b"],
        "w1": params["w1"].astype(mm_dtype), "b1": params["b1"],
        "w2": params["w2"].astype(mm_dtype), "b2": params["b2"],
    }


def _num_tensorcores_per_chip():
    """Best-effort TensorCores-per-device (1 on v5e/v6e, 2 on megacore parts).
    Only used to pick a default batch_tile; safely falls back to 1."""
    try:
        info = pltpu.get_tpu_info()
        for name in ("num_cores", "core_count", "num_tensorcores", "tensorcore_count"):
            n = getattr(info, name, None)
            if n:
                return int(n)
    except Exception:
        pass
    try:
        n = getattr(jax.devices()[0], "num_cores", None)
        if n:
            return int(n)
    except Exception:
        pass
    return 1


def transformer_block(x, params, *, num_heads, batch_tile=None):
    """x: (B, S, E) float32.
    batch_tile=None -> chip-aware default: collapsed grid (batch_tile=B) on
    single-TensorCore chips (v5e/v6e); >=1 grid step per core on megacore parts.
    batch_tile may also be forced explicitly (1 or B)."""
    B, S, E = x.shape
    H = num_heads
    U0 = params["w1"].shape[1]
    U1 = params["w2"].shape[1]

    if batch_tile is None:
        n_tc = _num_tensorcores_per_chip()
        if n_tc <= 1:
            batch_tile = B                      # grid=(1,): no per-step overhead
        else:
            steps = min(n_tc, B)
            batch_tile = max(1, B // steps)
            while B % batch_tile:
                batch_tile -= 1
    assert B % batch_tile == 0

    prep = _prepare_weights(params, num_heads=H, batch_tile=batch_tile)
    weight_order = ["ln1_g", "ln1_b", "wqkv", "bqkv", "wo", "bo",
                    "ln2_g", "ln2_b", "w1", "b1", "w2", "b2"]
    weight_args = [prep[name] for name in weight_order]

    # Grid-invariant weights: constant index_map + single buffer (no dead 2nd copy).
    def weight_spec(a):
        return pl.BlockSpec(a.shape, lambda i: (0,) * a.ndim,
                            pipeline_mode=pl.Buffered(1))

    in_specs = [pl.BlockSpec((batch_tile, S, E), lambda i: (i, 0, 0))]
    in_specs += [weight_spec(a) for a in weight_args]
    out_specs = pl.BlockSpec((batch_tile, S, E), lambda i: (i, 0, 0))

    grid = (B // batch_tile,)
    # "parallel" lets megacore shard the batch axis; on v7x verify the split in
    # xprof and consider pltpu.CORE_PARALLEL / core_map if both steps land on one TC.
    dim_sem = ("parallel",) if grid[0] > 1 else ("arbitrary",)

    # Cost hint for XLA scheduling around the custom call.
    flops = 2 * B * S * (4 * E * E + 2 * S * E + E * U0 + U0 * U1)
    transcendentals = B * (H * S * S + H * S + 2 * S)          # exp + rcp + rsqrt
    bytes_accessed = 2 * x.size * x.dtype.itemsize + sum(int(a.nbytes) for a in weight_args)

    kernel = functools.partial(_transformer_block_kernel, num_heads=H)

    return pl.pallas_call(
        kernel,
        out_shape=jax.ShapeDtypeStruct((B, S, E), x.dtype),
        grid_spec=pltpu.PrefetchScalarGridSpec(
            num_scalar_prefetch=0,
            grid=grid,
            in_specs=in_specs,
            out_specs=out_specs,
        ),
        compiler_params=pltpu.CompilerParams(
            dimension_semantics=dim_sem,
            vmem_limit_bytes=32 * 1024 * 1024,
        ),
        cost_estimate=pl.CostEstimate(
            flops=flops,
            transcendentals=transcendentals,
            bytes_accessed=bytes_accessed,
        ),
    )(x, *weight_args)


def init_params(key, E, num_heads, transformer_units):
    """Deterministic synthetic parameters. Linear weights stored pre-transposed
    so y = x @ W + b (equivalent to PyTorch x @ W^T + b)."""
    U0, U1 = transformer_units
    assert U1 == E, "transformer_units[1] must equal projection_dim for the residual"
    ks = jax.random.split(key, 10)
    s = 0.05
    return {
        "ln1_g": jnp.ones((1, E), jnp.float32),
        "ln1_b": jnp.zeros((1, E), jnp.float32),
        "wq": s * jax.random.normal(ks[0], (E, E), jnp.float32),
        "bq": s * jax.random.normal(ks[1], (1, E), jnp.float32),
        "wk": s * jax.random.normal(ks[2], (E, E), jnp.float32),
        "bk": s * jax.random.normal(ks[3], (1, E), jnp.float32),
        "wv": s * jax.random.normal(ks[4], (E, E), jnp.float32),
        "bv": s * jax.random.normal(ks[5], (1, E), jnp.float32),
        "wo": s * jax.random.normal(ks[6], (E, E), jnp.float32),
        "bo": jnp.zeros((1, E), jnp.float32),
        "ln2_g": jnp.ones((1, E), jnp.float32),
        "ln2_b": jnp.zeros((1, E), jnp.float32),
        "w1": s * jax.random.normal(ks[7], (E, U0), jnp.float32),
        "b1": s * jax.random.normal(ks[8], (1, U0), jnp.float32),
        "w2": s * jax.random.normal(ks[9], (U0, U1), jnp.float32),
        "b2": jnp.zeros((1, U1), jnp.float32),
    }


def reference_block(x, p, *, num_heads):
    """Pure-JAX f32 reference (inference-mode dropout) for correctness checking."""
    eps = 1e-5
    B, S, E = x.shape
    Dh = E // num_heads

    def ln(z, g, b):
        mu = jnp.mean(z, axis=-1, keepdims=True)
        var = jnp.mean((z - mu) ** 2, axis=-1, keepdims=True)
        return (z - mu) / jnp.sqrt(var + eps) * g + b

    x1 = ln(x, p["ln1_g"], p["ln1_b"])
    q = x1 @ p["wq"] + p["bq"]
    k = x1 @ p["wk"] + p["bk"]
    v = x1 @ p["wv"] + p["bv"]
    q = q.reshape(B, S, num_heads, Dh).transpose(0, 2, 1, 3) / math.sqrt(Dh)
    k = k.reshape(B, S, num_heads, Dh).transpose(0, 2, 1, 3)
    v = v.reshape(B, S, num_heads, Dh).transpose(0, 2, 1, 3)
    s = jnp.einsum("bhqd,bhkd->bhqk", q, k)
    patt = jax.nn.softmax(s, axis=-1)
    a = jnp.einsum("bhqk,bhkd->bhqd", patt, v).transpose(0, 2, 1, 3).reshape(B, S, E)
    a = a @ p["wo"] + p["bo"]
    x2 = a + x
    x3 = ln(x2, p["ln2_g"], p["ln2_b"])
    h1 = jnp.maximum(x3 @ p["w1"] + p["b1"], 0.0)
    h2 = jnp.maximum(h1 @ p["w2"] + p["b2"], 0.0)
    return h2 + x2


if __name__ == "__main__":
    B, S, E = 2, 8, 32
    num_heads = 4
    transformer_units = (64, 32)   # [mlp hidden, projection_dim]

    key = jax.random.PRNGKey(0)
    kx, kp = jax.random.split(key)
    x = jax.random.normal(kx, (B, S, E), jnp.float32)
    params = init_params(kp, E, num_heads, transformer_units)

    ref = reference_block(x, params, num_heads=num_heads)

    # bf16 weight-matmul operands (f32 accumulation) slightly loosen the match vs
    # the pure-f32 reference; 1e-2 comfortably covers it while catching real bugs.
    tol = dict(rtol=1e-2, atol=1e-2)

    # Chip-aware default batch_tile (collapsed grid on single-TC chips).
    out_auto = jax.block_until_ready(
        transformer_block(x, params, num_heads=num_heads))
    assert out_auto.shape == (B, S, E)
    assert jnp.allclose(out_auto, ref, **tol), "mismatch vs JAX reference (auto tile)"

    # batch_tile=1: grid=(B,) -> >=2 parallel steps (megacore-friendly path).
    out1 = jax.block_until_ready(
        transformer_block(x, params, num_heads=num_heads, batch_tile=1))
    assert jnp.allclose(out1, ref, **tol), "mismatch vs JAX reference (batch_tile=1)"

    # batch_tile=B: grid=(1,) fully-collapsed grid (preferred on single-TC v5e/v6e).
    out2 = jax.block_until_ready(
        transformer_block(x, params, num_heads=num_heads, batch_tile=B))
    assert jnp.allclose(out2, ref, **tol), "mismatch vs JAX reference (batch_tile=B)"

    print("KERNEL_OK")
</pallas_src>

<mosaic_0001>
module attributes {stable_mosaic.version = 11 : i64} {
  func.func @_transformer_block_kernel(%arg0: i32, %arg1: memref<2x8x32xf32, #tpu.memory_space<vmem>>, %arg2: memref<1x32xf32, #tpu.memory_space<vmem>>, %arg3: memref<1x32xf32, #tpu.memory_space<vmem>>, %arg4: memref<32x96xbf16, #tpu.memory_space<vmem>>, %arg5: memref<1x96xf32, #tpu.memory_space<vmem>>, %arg6: memref<8x8x32xbf16, #tpu.memory_space<vmem>>, %arg7: memref<1x32xf32, #tpu.memory_space<vmem>>, %arg8: memref<1x32xf32, #tpu.memory_space<vmem>>, %arg9: memref<1x32xf32, #tpu.memory_space<vmem>>, %arg10: memref<32x64xbf16, #tpu.memory_space<vmem>>, %arg11: memref<1x64xf32, #tpu.memory_space<vmem>>, %arg12: memref<64x32xbf16, #tpu.memory_space<vmem>>, %arg13: memref<1x32xf32, #tpu.memory_space<vmem>>, %arg14: memref<2x8x32xf32, #tpu.memory_space<vmem>>) attributes {dimension_semantics = [#tpu.dimension_semantics<arbitrary>], iteration_bounds = array<i64: 1>, scalar_prefetch = 0 : i64, scratch_operands = 0 : i64, tpu.core_type = #tpu.core_type<tc>, window_params = [{transform_indices = @transform_0, window_bounds = array<i64: 2, 8, 32>}, {pipeline_mode = #tpu.pipeline_mode<synchronous>, transform_indices = @transform_1, window_bounds = array<i64: 1, 32>}, {pipeline_mode = #tpu.pipeline_mode<synchronous>, transform_indices = @transform_2, window_bounds = array<i64: 1, 32>}, {pipeline_mode = #tpu.pipeline_mode<synchronous>, transform_indices = @transform_3, window_bounds = array<i64: 32, 96>}, {pipeline_mode = #tpu.pipeline_mode<synchronous>, transform_indices = @transform_4, window_bounds = array<i64: 1, 96>}, {pipeline_mode = #tpu.pipeline_mode<synchronous>, transform_indices = @transform_5, window_bounds = array<i64: 8, 8, 32>}, {pipeline_mode = #tpu.pipeline_mode<synchronous>, transform_indices = @transform_6, window_bounds = array<i64: 1, 32>}, {pipeline_mode = #tpu.pipeline_mode<synchronous>, transform_indices = @transform_7, window_bounds = array<i64: 1, 32>}, {pipeline_mode = #tpu.pipeline_mode<synchronous>, transform_indices = @transform_8, window_bounds = array<i64: 1, 32>}, {pipeline_mode = #tpu.pipeline_mode<synchronous>, transform_indices = @transform_9, window_bounds = array<i64: 32, 64>}, {pipeline_mode = #tpu.pipeline_mode<synchronous>, transform_indices = @transform_10, window_bounds = array<i64: 1, 64>}, {pipeline_mode = #tpu.pipeline_mode<synchronous>, transform_indices = @transform_11, window_bounds = array<i64: 64, 32>}, {pipeline_mode = #tpu.pipeline_mode<synchronous>, transform_indices = @transform_12, window_bounds = array<i64: 1, 32>}, {transform_indices = @transform_13, window_bounds = array<i64: 2, 8, 32>}]} {
    %c0 = arith.constant 0 : index
    %c0_0 = arith.constant 0 : index
    %c0_1 = arith.constant 0 : index
    %0 = vector.load %arg1[%c0, %c0_0, %c0_1] : memref<2x8x32xf32, #tpu.memory_space<vmem>>, vector<2x8x32xf32>
    %1 = vector.shape_cast %0 : vector<2x8x32xf32> to vector<16x32xf32>
    %cst = arith.constant dense<0.000000e+00> : vector<16xf32>
    %2 = vector.multi_reduction <add>, %1, %cst [1] : vector<16x32xf32> to vector<16xf32>
    %3 = vector.shape_cast %2 : vector<16xf32> to vector<16x1xf32>
    %cst_2 = arith.constant 3.200000e+01 : f32
    %4 = vector.broadcast %cst_2 : f32 to vector<16x1xf32>
    %5 = arith.divf %3, %4 : vector<16x1xf32>
    %6 = vector.broadcast %5 : vector<16x1xf32> to vector<16x32xf32>
    %7 = arith.subf %1, %6 : vector<16x32xf32>
    %8 = arith.mulf %7, %7 : vector<16x32xf32>
    %cst_3 = arith.constant dense<0.000000e+00> : vector<16xf32>
    %9 = vector.multi_reduction <add>, %8, %cst_3 [1] : vector<16x32xf32> to vector<16xf32>
    %10 = vector.shape_cast %9 : vector<16xf32> to vector<16x1xf32>
    %cst_4 = arith.constant 3.200000e+01 : f32
    %11 = vector.broadcast %cst_4 : f32 to vector<16x1xf32>
    %12 = arith.divf %10, %11 : vector<16x1xf32>
    %13 = vector.broadcast %5 : vector<16x1xf32> to vector<16x32xf32>
    %14 = arith.subf %1, %13 : vector<16x32xf32>
    %cst_5 = arith.constant 9.99999974E-6 : f32
    %15 = vector.broadcast %cst_5 : f32 to vector<16x1xf32>
    %16 = arith.addf %12, %15 : vector<16x1xf32>
    %17 = math.rsqrt %16 : vector<16x1xf32>
    %18 = vector.broadcast %17 : vector<16x1xf32> to vector<16x32xf32>
    %19 = arith.mulf %14, %18 : vector<16x32xf32>
    %c0_6 = arith.constant 0 : index
    %c0_7 = arith.constant 0 : index
    %20 = vector.load %arg2[%c0_6, %c0_7] : memref<1x32xf32, #tpu.memory_space<vmem>>, vector<1x32xf32>
    %21 = vector.broadcast %20 : vector<1x32xf32> to vector<16x32xf32>
    %22 = arith.mulf %19, %21 : vector<16x32xf32>
    %c0_8 = arith.constant 0 : index
    %c0_9 = arith.constant 0 : index
    %23 = vector.load %arg3[%c0_8, %c0_9] : memref<1x32xf32, #tpu.memory_space<vmem>>, vector<1x32xf32>
    %24 = vector.broadcast %23 : vector<1x32xf32> to vector<16x32xf32>
    %25 = arith.addf %22, %24 : vector<16x32xf32>
    %26 = arith.truncf %25 : vector<16x32xf32> to vector<16x32xbf16>
    %c0_10 = arith.constant 0 : index
    %c0_11 = arith.constant 0 : index
    %27 = vector.load %arg4[%c0_10, %c0_11] : memref<32x96xbf16, #tpu.memory_space<vmem>>, vector<32x96xbf16>
    %cst_12 = arith.constant dense<0.000000e+00> : vector<16x96xf32>
    %28 = tpu.matmul %26, %27, %cst_12 {dimension_numbers = #tpu.dot_dimension_numbers<[1], [0], [0], [1], [0, 0, 1, 1], [], []>} : vector<16x32xbf16>, vector<32x96xbf16>, vector<16x96xf32> -> vector<16x96xf32>
    %c0_13 = arith.constant 0 : index
    %c0_14 = arith.constant 0 : index
    %29 = vector.load %arg5[%c0_13, %c0_14] : memref<1x96xf32, #tpu.memory_space<vmem>>, vector<1x96xf32>
    %30 = vector.broadcast %29 : vector<1x96xf32> to vector<16x96xf32>
    %31 = arith.addf %28, %30 : vector<16x96xf32>
    %32 = vector.shape_cast %31 : vector<16x96xf32> to vector<2x8x96xf32>
    %33 = vector.extract_strided_slice %32 {offsets = [0, 0, 0], sizes = [2, 8, 24], strides = [1, 1, 1]} : vector<2x8x96xf32> to vector<2x8x24xf32>
    %34 = vector.extract_strided_slice %32 {offsets = [0, 0, 24], sizes = [2, 8, 24], strides = [1, 1, 1]} : vector<2x8x96xf32> to vector<2x8x24xf32>
    %35 = vector.extract_strided_slice %32 {offsets = [0, 0, 48], sizes = [2, 8, 24], strides = [1, 1, 1]} : vector<2x8x96xf32> to vector<2x8x24xf32>
    %36 = vector.extract_strided_slice %32 {offsets = [0, 0, 72], sizes = [2, 8, 24], strides = [1, 1, 1]} : vector<2x8x96xf32> to vector<2x8x24xf32>
    %37 = vector.shape_cast %33 : vector<2x8x24xf32> to vector<2x1x8x24xf32>
    %38 = vector.shape_cast %34 : vector<2x8x24xf32> to vector<2x1x8x24xf32>
    %39 = vector.shape_cast %35 : vector<2x8x24xf32> to vector<2x1x8x24xf32>
    %40 = vector.shape_cast %36 : vector<2x8x24xf32> to vector<2x1x8x24xf32>
    %41 = tpu.concatenate %37, %38, %39, %40 in 1 : vector<2x1x8x24xf32>, vector<2x1x8x24xf32>, vector<2x1x8x24xf32>, vector<2x1x8x24xf32> -> vector<2x4x8x24xf32>
    %42 = vector.shape_cast %41 : vector<2x4x8x24xf32> to vector<8x8x24xf32>
    %43 = vector.extract_strided_slice %42 {offsets = [0, 0, 0], sizes = [8, 8, 8], strides = [1, 1, 1]} : vector<8x8x24xf32> to vector<8x8x8xf32>
    %44 = vector.extract_strided_slice %42 {offsets = [0, 0, 8], sizes = [8, 8, 8], strides = [1, 1, 1]} : vector<8x8x24xf32> to vector<8x8x8xf32>
    %45 = vector.extract_strided_slice %42 {offsets = [0, 0, 16], sizes = [8, 8, 8], strides = [1, 1, 1]} : vector<8x8x24xf32> to vector<8x8x8xf32>
    "tpu.trace_start"() <{level = 10 : i32, message = "hqd,hkd->hqk"}> : () -> ()
    %cst_15 = arith.constant dense<0.000000e+00> : vector<8x8x8xf32>
    %46 = tpu.matmul %43, %44, %cst_15 {dimension_numbers = #tpu.dot_dimension_numbers<[2], [2], [1], [1], [0, 0, 0, 1, 1, 1], [0], [0]>} : vector<8x8x8xf32>, vector<8x8x8xf32>, vector<8x8x8xf32> -> vector<8x8x8xf32>
    "tpu.trace_stop"() : () -> ()
    %cst_16 = arith.constant dense<0xFF800000> : vector<8x8xf32>
    %47 = vector.multi_reduction <maximumf>, %46, %cst_16 [2] : vector<8x8x8xf32> to vector<8x8xf32>
    %48 = vector.shape_cast %47 : vector<8x8xf32> to vector<8x8x1xf32>
    %49 = vector.broadcast %48 : vector<8x8x1xf32> to vector<8x8x8xf32>
    %50 = arith.subf %46, %49 : vector<8x8x8xf32>
    %51 = math.exp %50 : vector<8x8x8xf32>
    %cst_17 = arith.constant dense<0.000000e+00> : vector<8x8xf32>
    %52 = vector.multi_reduction <add>, %51, %cst_17 [2] : vector<8x8x8xf32> to vector<8x8xf32>
    %53 = vector.shape_cast %52 : vector<8x8xf32> to vector<8x8x1xf32>
    %54 = tpu.reciprocal %53 {approx = true} : vector<8x8x1xf32> -> vector<8x8x1xf32>
    %55 = vector.broadcast %54 : vector<8x8x1xf32> to vector<8x8x8xf32>
    %56 = arith.mulf %51, %55 : vector<8x8x8xf32>
    "tpu.trace_start"() <{level = 10 : i32, message = "hqk,hkd->hqd"}> : () -> ()
    %cst_18 = arith.constant dense<0.000000e+00> : vector<8x8x8xf32>
    %57 = tpu.matmul %56, %45, %cst_18 {dimension_numbers = #tpu.dot_dimension_numbers<[2], [1], [1], [2], [0, 0, 0, 1, 1, 2], [0], [0]>} : vector<8x8x8xf32>, vector<8x8x8xf32>, vector<8x8x8xf32> -> vector<8x8x8xf32>
    "tpu.trace_stop"() : () -> ()
    %58 = arith.truncf %57 : vector<8x8x8xf32> to vector<8x8x8xbf16>
    %c0_19 = arith.constant 0 : index
    %c0_20 = arith.constant 0 : index
    %c0_21 = arith.constant 0 : index
    %59 = vector.load %arg6[%c0_19, %c0_20, %c0_21] : memref<8x8x32xbf16, #tpu.memory_space<vmem>>, vector<8x8x32xbf16>
    "tpu.trace_start"() <{level = 10 : i32, message = "hqd,hde->hqe"}> : () -> ()
    %cst_22 = arith.constant dense<0.000000e+00> : vector<8x8x32xf32>
    %60 = tpu.matmul %58, %59, %cst_22 {dimension_numbers = #tpu.dot_dimension_numbers<[2], [1], [1], [2], [0, 0, 0, 1, 1, 2], [0], [0]>} : vector<8x8x8xbf16>, vector<8x8x32xbf16>, vector<8x8x32xf32> -> vector<8x8x32xf32>
    "tpu.trace_stop"() : () -> ()
    %61 = vector.shape_cast %60 : vector<8x8x32xf32> to vector<2x4x8x32xf32>
    %cst_23 = arith.constant dense<0.000000e+00> : vector<2x8x32xf32>
    %62 = vector.multi_reduction <add>, %61, %cst_23 [1] : vector<2x4x8x32xf32> to vector<2x8x32xf32>
    %63 = vector.shape_cast %62 : vector<2x8x32xf32> to vector<16x32xf32>
    %c0_24 = arith.constant 0 : index
    %c0_25 = arith.constant 0 : index
    %64 = vector.load %arg7[%c0_24, %c0_25] : memref<1x32xf32, #tpu.memory_space<vmem>>, vector<1x32xf32>
    %65 = vector.broadcast %64 : vector<1x32xf32> to vector<16x32xf32>
    %66 = arith.addf %63, %65 : vector<16x32xf32>
    %67 = arith.addf %66, %1 : vector<16x32xf32>
    %cst_26 = arith.constant dense<0.000000e+00> : vector<16xf32>
    %68 = vector.multi_reduction <add>, %67, %cst_26 [1] : vector<16x32xf32> to vector<16xf32>
    %69 = vector.shape_cast %68 : vector<16xf32> to vector<16x1xf32>
    %cst_27 = arith.constant 3.200000e+01 : f32
    %70 = vector.broadcast %cst_27 : f32 to vector<16x1xf32>
    %71 = arith.divf %69, %70 : vector<16x1xf32>
    %72 = vector.broadcast %71 : vector<16x1xf32> to vector<16x32xf32>
    %73 = arith.subf %67, %72 : vector<16x32xf32>
    %74 = arith.mulf %73, %73 : vector<16x32xf32>
    %cst_28 = arith.constant dense<0.000000e+00> : vector<16xf32>
    %75 = vector.multi_reduction <add>, %74, %cst_28 [1] : vector<16x32xf32> to vector<16xf32>
    %76 = vector.shape_cast %75 : vector<16xf32> to vector<16x1xf32>
    %cst_29 = arith.constant 3.200000e+01 : f32
    %77 = vector.broadcast %cst_29 : f32 to vector<16x1xf32>
    %78 = arith.divf %76, %77 : vector<16x1xf32>
    %79 = vector.broadcast %71 : vector<16x1xf32> to vector<16x32xf32>
    %80 = arith.subf %67, %79 : vector<16x32xf32>
    %cst_30 = arith.constant 9.99999974E-6 : f32
    %81 = vector.broadcast %cst_30 : f32 to vector<16x1xf32>
    %82 = arith.addf %78, %81 : vector<16x1xf32>
    %83 = math.rsqrt %82 : vector<16x1xf32>
    %84 = vector.broadcast %83 : vector<16x1xf32> to vector<16x32xf32>
    %85 = arith.mulf %80, %84 : vector<16x32xf32>
    %c0_31 = arith.constant 0 : index
    %c0_32 = arith.constant 0 : index
    %86 = vector.load %arg8[%c0_31, %c0_32] : memref<1x32xf32, #tpu.memory_space<vmem>>, vector<1x32xf32>
    %87 = vector.broadcast %86 : vector<1x32xf32> to vector<16x32xf32>
    %88 = arith.mulf %85, %87 : vector<16x32xf32>
    %c0_33 = arith.constant 0 : index
    %c0_34 = arith.constant 0 : index
    %89 = vector.load %arg9[%c0_33, %c0_34] : memref<1x32xf32, #tpu.memory_space<vmem>>, vector<1x32xf32>
    %90 = vector.broadcast %89 : vector<1x32xf32> to vector<16x32xf32>
    %91 = arith.addf %88, %90 : vector<16x32xf32>
    %92 = arith.truncf %91 : vector<16x32xf32> to vector<16x32xbf16>
    %c0_35 = arith.constant 0 : index
    %c0_36 = arith.constant 0 : index
    %93 = vector.load %arg10[%c0_35, %c0_36] : memref<32x64xbf16, #tpu.memory_space<vmem>>, vector<32x64xbf16>
    %cst_37 = arith.constant dense<0.000000e+00> : vector<16x64xf32>
    %94 = tpu.matmul %92, %93, %cst_37 {dimension_numbers = #tpu.dot_dimension_numbers<[1], [0], [0], [1], [0, 0, 1, 1], [], []>} : vector<16x32xbf16>, vector<32x64xbf16>, vector<16x64xf32> -> vector<16x64xf32>
    %c0_38 = arith.constant 0 : index
    %c0_39 = arith.constant 0 : index
    %95 = vector.load %arg11[%c0_38, %c0_39] : memref<1x64xf32, #tpu.memory_space<vmem>>, vector<1x64xf32>
    %96 = vector.broadcast %95 : vector<1x64xf32> to vector<16x64xf32>
    %97 = arith.addf %94, %96 : vector<16x64xf32>
    %cst_40 = arith.constant 0.000000e+00 : f32
    %98 = vector.broadcast %cst_40 : f32 to vector<16x64xf32>
    %99 = arith.maximumf %97, %98 : vector<16x64xf32>
    %100 = arith.truncf %99 : vector<16x64xf32> to vector<16x64xbf16>
    %c0_41 = arith.constant 0 : index
    %c0_42 = arith.constant 0 : index
    %101 = vector.load %arg12[%c0_41, %c0_42] : memref<64x32xbf16, #tpu.memory_space<vmem>>, vector<64x32xbf16>
    %cst_43 = arith.constant dense<0.000000e+00> : vector<16x32xf32>
    %102 = tpu.matmul %100, %101, %cst_43 {dimension_numbers = #tpu.dot_dimension_numbers<[1], [0], [0], [1], [0, 0, 1, 1], [], []>} : vector<16x64xbf16>, vector<64x32xbf16>, vector<16x32xf32> -> vector<16x32xf32>
    %c0_44 = arith.constant 0 : index
    %c0_45 = arith.constant 0 : index
    %103 = vector.load %arg13[%c0_44, %c0_45] : memref<1x32xf32, #tpu.memory_space<vmem>>, vector<1x32xf32>
    %104 = vector.broadcast %103 : vector<1x32xf32> to vector<16x32xf32>
    %105 = arith.addf %102, %104 : vector<16x32xf32>
    %cst_46 = arith.constant 0.000000e+00 : f32
    %106 = vector.broadcast %cst_46 : f32 to vector<16x32xf32>
    %107 = arith.maximumf %105, %106 : vector<16x32xf32>
    %108 = arith.addf %107, %67 : vector<16x32xf32>
    %109 = vector.shape_cast %108 : vector<16x32xf32> to vector<2x8x32xf32>
    %c0_47 = arith.constant 0 : index
    %c0_48 = arith.constant 0 : index
    %c0_49 = arith.constant 0 : index
    %110 = vector.load %arg14[%c0_47, %c0_48, %c0_49] : memref<2x8x32xf32, #tpu.memory_space<vmem>>, vector<2x8x32xf32>
    tpu.vector_store %arg14[%c0_47, %c0_48, %c0_49], %109 {strides = array<i32>} : memref<2x8x32xf32, #tpu.memory_space<vmem>>, vector<2x8x32xf32>,
    return
  }
  func.func @transform_0(%arg0: i32) -> (i32, i32, i32) {
    %c0_i32 = arith.constant 0 : i32
    %c0_i32_0 = arith.constant 0 : i32
    %c0_i32_1 = arith.constant 0 : i32
    return %arg0, %c0_i32, %c0_i32_0 : i32, i32, i32
  }
  func.func @transform_1(%arg0: i32) -> (i32, i32) {
    %c0_i32 = arith.constant 0 : i32
    %c0_i32_0 = arith.constant 0 : i32
    %c0_i32_1 = arith.constant 0 : i32
    return %c0_i32, %c0_i32_0 : i32, i32
  }
  func.func @transform_2(%arg0: i32) -> (i32, i32) {
    %c0_i32 = arith.constant 0 : i32
    %c0_i32_0 = arith.constant 0 : i32
    %c0_i32_1 = arith.constant 0 : i32
    return %c0_i32, %c0_i32_0 : i32, i32
  }
  func.func @transform_3(%arg0: i32) -> (i32, i32) {
    %c0_i32 = arith.constant 0 : i32
    %c0_i32_0 = arith.constant 0 : i32
    %c0_i32_1 = arith.constant 0 : i32
    return %c0_i32, %c0_i32_0 : i32, i32
  }
  func.func @transform_4(%arg0: i32) -> (i32, i32) {
    %c0_i32 = arith.constant 0 : i32
    %c0_i32_0 = arith.constant 0 : i32
    %c0_i32_1 = arith.constant 0 : i32
    return %c0_i32, %c0_i32_0 : i32, i32
  }
  func.func @transform_5(%arg0: i32) -> (i32, i32, i32) {
    %c0_i32 = arith.constant 0 : i32
    %c0_i32_0 = arith.constant 0 : i32
    %c0_i32_1 = arith.constant 0 : i32
    %c0_i32_2 = arith.constant 0 : i32
    return %c0_i32, %c0_i32_0, %c0_i32_1 : i32, i32, i32
  }
  func.func @transform_6(%arg0: i32) -> (i32, i32) {
    %c0_i32 = arith.constant 0 : i32
    %c0_i32_0 = arith.constant 0 : i32
    %c0_i32_1 = arith.constant 0 : i32
    return %c0_i32, %c0_i32_0 : i32, i32
  }
  func.func @transform_7(%arg0: i32) -> (i32, i32) {
    %c0_i32 = arith.constant 0 : i32
    %c0_i32_0 = arith.constant 0 : i32
    %c0_i32_1 = arith.constant 0 : i32
    return %c0_i32, %c0_i32_0 : i32, i32
  }
  func.func @transform_8(%arg0: i32) -> (i32, i32) {
    %c0_i32 = arith.constant 0 : i32
    %c0_i32_0 = arith.constant 0 : i32
    %c0_i32_1 = arith.constant 0 : i32
    return %c0_i32, %c0_i32_0 : i32, i32
  }
  func.func @transform_9(%arg0: i32) -> (i32, i32) {
    %c0_i32 = arith.constant 0 : i32
    %c0_i32_0 = arith.constant 0 : i32
    %c0_i32_1 = arith.constant 0 : i32
    return %c0_i32, %c0_i32_0 : i32, i32
  }
  func.func @transform_10(%arg0: i32) -> (i32, i32) {
    %c0_i32 = arith.constant 0 : i32
    %c0_i32_0 = arith.constant 0 : i32
    %c0_i32_1 = arith.constant 0 : i32
    return %c0_i32, %c0_i32_0 : i32, i32
  }
  func.func @transform_11(%arg0: i32) -> (i32, i32) {
    %c0_i32 = arith.constant 0 : i32
    %c0_i32_0 = arith.constant 0 : i32
    %c0_i32_1 = arith.constant 0 : i32
    return %c0_i32, %c0_i32_0 : i32, i32
  }
  func.func @transform_12(%arg0: i32) -> (i32, i32) {
    %c0_i32 = arith.constant 0 : i32
    %c0_i32_0 = arith.constant 0 : i32
    %c0_i32_1 = arith.constant 0 : i32
    return %c0_i32, %c0_i32_0 : i32, i32
  }
  func.func @transform_13(%arg0: i32) -> (i32, i32, i32) {
    %c0_i32 = arith.constant 0 : i32
    %c0_i32_0 = arith.constant 0 : i32
    %c0_i32_1 = arith.constant 0 : i32
    return %arg0, %c0_i32, %c0_i32_0 : i32, i32, i32
  }
}

</mosaic_0001>

<llo_original>
// kernel: tpu_custom_call.1
$region0: #{tpu_custom_call.1}
  #allocation0 [shape = 'u32[]', space=smem, size = 0x4, offset = 0x4, fixed_abs, tag = 'smem constant byte address 0x4 - core index']
  #allocation1 [shape = 'u32[144,128]{1,0:T(1,128)}', space=vmem, size = 0x12000, scoped, tag = 'internal scratch']
  %s0 = inlined_call_operand.vmem [shape: f32[2,8,32], index: 0, kind: input, shape index: {}]
  %s1 = inlined_call_operand.hbm [shape: f32[1,32], index: 1, kind: input, shape index: {}]
  %s2 = inlined_call_operand.hbm [shape: f32[1,32], index: 2, kind: input, shape index: {}]
  %s3 = inlined_call_operand.hbm [shape: bf16[32,96], index: 3, kind: input, shape index: {}]
  %s4 = inlined_call_operand.hbm [shape: f32[1,96], index: 4, kind: input, shape index: {}]
  %s5 = inlined_call_operand.vmem [shape: bf16[8,8,32], index: 5, kind: input, shape index: {}]
  %s6 = inlined_call_operand.hbm [shape: f32[1,32], index: 6, kind: input, shape index: {}]
  %s7 = inlined_call_operand.hbm [shape: f32[1,32], index: 7, kind: input, shape index: {}]
  %s8 = inlined_call_operand.hbm [shape: f32[1,32], index: 8, kind: input, shape index: {}]
  %s9 = inlined_call_operand.vmem [shape: bf16[32,64], index: 9, kind: input, shape index: {}]
  %s10 = inlined_call_operand.vmem [shape: f32[1,64], index: 10, kind: input, shape index: {}]
  %s11 = inlined_call_operand.vmem [shape: bf16[64,32], index: 11, kind: input, shape index: {}]
  %s12 = inlined_call_operand.vmem [shape: f32[1,32], index: 12, kind: input, shape index: {}]
  %s13 = inlined_call_operand.hbm [shape: f32[2,8,32], index: 13, kind: output, shape index: {}]
  %s14 = sld [smem:[#allocation0]]
  $region90: #{tpu_custom_call.1} parent=0
    _
  %s16 = ssub.s32 1, %s14
  %s17 = scalar_select 0, %s16, %s14
  $region1: #{tpu_custom_call.1} parent=0
    #allocation2 [shape = 'u8[512]{0}', space=vmem, size = 0x400, scoped, tag = 'input window, operand 1, single buffered']
    #allocation3 [shape = 's32[1]{0}', space=sflag, size = 0x4, scoped, tag = 'scoped memory for tpu_custom_call.1']
    #allocation4 [shape = 's32[1]{0}', space=sflag, size = 0x4, scoped, tag = 'scoped memory for tpu_custom_call.1']
    #allocation5 [shape = 'u8[512]{0}', space=vmem, size = 0x400, scoped, tag = 'input window, operand 2, single buffered']
    #allocation6 [shape = 's32[1]{0}', space=sflag, size = 0x4, scoped, tag = 'scoped memory for tpu_custom_call.1']
    #allocation7 [shape = 'u8[8192]{0}', space=vmem, size = 0x2000, scoped, tag = 'input window, operand 3, single buffered']
    #allocation8 [shape = 'u8[512]{0}', space=vmem, size = 0x400, scoped, tag = 'input window, operand 4, single buffered']
    #allocation9 [shape = 's32[1]{0}', space=sflag, size = 0x4, scoped, tag = 'scoped memory for tpu_custom_call.1']
    #allocation10 [shape = 'u8[512]{0}', space=vmem, size = 0x400, scoped, tag = 'input window, operand 6, single buffered']
    #allocation11 [shape = 'u8[512]{0}', space=vmem, size = 0x400, scoped, tag = 'input window, operand 7, single buffered']
    #allocation12 [shape = 's32[1]{0}', space=sflag, size = 0x4, scoped, tag = 'scoped memory for tpu_custom_call.1']
    #allocation13 [shape = 'u8[512]{0}', space=vmem, size = 0x400, scoped, tag = 'input window, operand 8, single buffered']
    #allocation14 [shape = 'u8[8192]{0}', space=vmem, size = 0x2000, scoped, tag = 'output window, operand 0, single buffered']
    %18 = vsyncpa [#allocation3], 0
    %19 = vsyncpa [#allocation6], 0
    %20 = vsyncpa [#allocation9], 0
    %21 = vsyncpa [#allocation12], 0
    %22 = vsyncpa [#allocation4], 0
    // Predicated region
    $region2: #{tpu_custom_call.1} parent=1 // pred_check
      _
    $region3: #{tpu_custom_call.1} parent=1 // pred_check_branch
      %24 = sbr.rel (0) target = $region5
    $region4: #{tpu_custom_call.1} parent=1 // pred_region
      _
    $region5: #{tpu_custom_call.1} parent=1 // pred_fallthru
      _
    // Predicated region
    $region6: #{tpu_custom_call.1} parent=1 // pred_check
      _
    $region7: #{tpu_custom_call.1} parent=1 // pred_check_branch
      %26 = sbr.rel (0) target = $region9
    $region8: #{tpu_custom_call.1} parent=1 // pred_region
      %s28 = ssub.s32 16, 16
      %29 = vsyncadd [#allocation3], %s28
      %s31 = sshll.u32 [#allocation2], 4
      %s32 = int_to_ptr.vmem [resolvable:$true] %s31
      %34 = dma.hbm_to_vmem [thread:$0]  %s1, 16, %s32, [#allocation3]
    $region9: #{tpu_custom_call.1} parent=1 // pred_fallthru
      _
    // Predicated region
    $region10: #{tpu_custom_call.1} parent=1 // pred_check
      _
    $region11: #{tpu_custom_call.1} parent=1 // pred_check_branch
      %36 = sbr.rel (0) target = $region13
    $region12: #{tpu_custom_call.1} parent=1 // pred_region
      %s38 = ssub.s32 16, 16
      %39 = vsyncadd [#allocation6], %s38
      %s41 = sshll.u32 [#allocation5], 4
      %s42 = int_to_ptr.vmem [resolvable:$true] %s41
      %44 = dma.hbm_to_vmem [thread:$0]  %s2, 16, %s42, [#allocation6]
    $region13: #{tpu_custom_call.1} parent=1 // pred_fallthru
      _
    // Predicated region
    $region14: #{tpu_custom_call.1} parent=1 // pred_check
      _
    $region15: #{tpu_custom_call.1} parent=1 // pred_check_branch
      %46 = sbr.rel (0) target = $region17
    $region16: #{tpu_custom_call.1} parent=1 // pred_region
      %s48 = ssub.s32 256, 256
      %49 = vsyncadd [#allocation6], %s48
      %s50 = sshll.u32 [#allocation7], 4
      %s51 = int_to_ptr.vmem [resolvable:$true] %s50
      %56 = dma.hbm_to_vmem [thread:$0]  %s3, 256, %s51, [#allocation6], 64, 64, 4
    $region17: #{tpu_custom_call.1} parent=1 // pred_fallthru
      _
    // Predicated region
    $region18: #{tpu_custom_call.1} parent=1 // pred_check
      _
    $region19: #{tpu_custom_call.1} parent=1 // pred_check_branch
      %58 = sbr.rel (0) target = $region21
    $region20: #{tpu_custom_call.1} parent=1 // pred_region
      %s60 = ssub.s32 16, 16
      %61 = vsyncadd [#allocation9], %s60
      %s63 = sshll.u32 [#allocation8], 4
      %s64 = int_to_ptr.vmem [resolvable:$true] %s63
      %66 = dma.hbm_to_vmem [thread:$0]  %s4, 16, %s64, [#allocation9]
    $region21: #{tpu_custom_call.1} parent=1 // pred_fallthru
      _
    // Predicated region
    $region22: #{tpu_custom_call.1} parent=1 // pred_check
      _
    $region23: #{tpu_custom_call.1} parent=1 // pred_check_branch
      %68 = sbr.rel (0) target = $region25
    $region24: #{tpu_custom_call.1} parent=1 // pred_region
      _
    $region25: #{tpu_custom_call.1} parent=1 // pred_fallthru
      _
    // Predicated region
    $region26: #{tpu_custom_call.1} parent=1 // pred_check
      _
    $region27: #{tpu_custom_call.1} parent=1 // pred_check_branch
      %70 = sbr.rel (0) target = $region29
    $region28: #{tpu_custom_call.1} parent=1 // pred_region
      %s72 = ssub.s32 16, 16
      %73 = vsyncadd [#allocation9], %s72
      %s75 = sshll.u32 [#allocation10], 4
      %s76 = int_to_ptr.vmem [resolvable:$true] %s75
      %78 = dma.hbm_to_vmem [thread:$0]  %s6, 16, %s76, [#allocation9]
    $region29: #{tpu_custom_call.1} parent=1 // pred_fallthru
      _
    // Predicated region
    $region30: #{tpu_custom_call.1} parent=1 // pred_check
      _
    $region31: #{tpu_custom_call.1} parent=1 // pred_check_branch
      %80 = sbr.rel (0) target = $region33
    $region32: #{tpu_custom_call.1} parent=1 // pred_region
      %s82 = ssub.s32 16, 16
      %83 = vsyncadd [#allocation12], %s82
      %s85 = sshll.u32 [#allocation11], 4
      %s86 = int_to_ptr.vmem [resolvable:$true] %s85
      %88 = dma.hbm_to_vmem [thread:$0]  %s7, 16, %s86, [#allocation12]
    $region33: #{tpu_custom_call.1} parent=1 // pred_fallthru
      _
    // Predicated region
    $region34: #{tpu_custom_call.1} parent=1 // pred_check
      _
    $region35: #{tpu_custom_call.1} parent=1 // pred_check_branch
      %90 = sbr.rel (0) target = $region37
    $region36: #{tpu_custom_call.1} parent=1 // pred_region
      %s92 = ssub.s32 16, 16
      %93 = vsyncadd [#allocation12], %s92
      %s95 = sshll.u32 [#allocation13], 4
      %s96 = int_to_ptr.vmem [resolvable:$true] %s95
      %98 = dma.hbm_to_vmem [thread:$0]  %s8, 16, %s96, [#allocation12]
    $region37: #{tpu_custom_call.1} parent=1 // pred_fallthru
      _
    // Predicated region
    $region38: #{tpu_custom_call.1} parent=1 // pred_check
      _
    $region39: #{tpu_custom_call.1} parent=1 // pred_check_branch
      %100 = sbr.rel (0) target = $region41
    $region40: #{tpu_custom_call.1} parent=1 // pred_region
      _
    $region41: #{tpu_custom_call.1} parent=1 // pred_fallthru
      _
    // Predicated region
    $region42: #{tpu_custom_call.1} parent=1 // pred_check
      _
    $region43: #{tpu_custom_call.1} parent=1 // pred_check_branch
      %102 = sbr.rel (0) target = $region45
    $region44: #{tpu_custom_call.1} parent=1 // pred_region
      _
    $region45: #{tpu_custom_call.1} parent=1 // pred_fallthru
      _
    // Predicated region
    $region46: #{tpu_custom_call.1} parent=1 // pred_check
      _
    $region47: #{tpu_custom_call.1} parent=1 // pred_check_branch
      %104 = sbr.rel (0) target = $region49
    $region48: #{tpu_custom_call.1} parent=1 // pred_region
      _
    $region49: #{tpu_custom_call.1} parent=1 // pred_fallthru
      _
    // Predicated region
    $region50: #{tpu_custom_call.1} parent=1 // pred_check
      _
    $region51: #{tpu_custom_call.1} parent=1 // pred_check_branch
      %106 = sbr.rel (0) target = $region53
    $region52: #{tpu_custom_call.1} parent=1 // pred_region
      _
    $region53: #{tpu_custom_call.1} parent=1 // pred_fallthru
      _
    // Predicated region
    $region54: #{tpu_custom_call.1} parent=1 // pred_check
      _
    $region55: #{tpu_custom_call.1} parent=1 // pred_check_branch
      %108 = sbr.rel (0) target = $region57
    $region56: #{tpu_custom_call.1} parent=1 // pred_region
      %109 = dma.done [#allocation3], 16
    $region57: #{tpu_custom_call.1} parent=1 // pred_fallthru
      _
    // Predicated region
    $region58: #{tpu_custom_call.1} parent=1 // pred_check
      _
    $region59: #{tpu_custom_call.1} parent=1 // pred_check_branch
      %111 = sbr.rel (0) target = $region61
    $region60: #{tpu_custom_call.1} parent=1 // pred_region
      %112 = dma.done [#allocation6], 16
    $region61: #{tpu_custom_call.1} parent=1 // pred_fallthru
      _
    // Predicated region
    $region62: #{tpu_custom_call.1} parent=1 // pred_check
      _
    $region63: #{tpu_custom_call.1} parent=1 // pred_check_branch
      %114 = sbr.rel (0) target = $region65
    $region64: #{tpu_custom_call.1} parent=1 // pred_region
      %115 = dma.done [#allocation6], 256
    $region65: #{tpu_custom_call.1} parent=1 // pred_fallthru
      _
    // Predicated region
    $region66: #{tpu_custom_call.1} parent=1 // pred_check
      _
    $region67: #{tpu_custom_call.1} parent=1 // pred_check_branch
      %117 = sbr.rel (0) target = $region69
    $region68: #{tpu_custom_call.1} parent=1 // pred_region
      %118 = dma.done [#allocation9], 16
    $region69: #{tpu_custom_call.1} parent=1 // pred_fallthru
      _
    // Predicated region
    $region70: #{tpu_custom_call.1} parent=1 // pred_check
      _
    $region71: #{tpu_custom_call.1} parent=1 // pred_check_branch
      %120 = sbr.rel (0) target = $region73
    $region72: #{tpu_custom_call.1} parent=1 // pred_region
      %121 = dma.done [#allocation9], 16
    $region73: #{tpu_custom_call.1} parent=1 // pred_fallthru
      _
    // Predicated region
    $region74: #{tpu_custom_call.1} parent=1 // pred_check
      _
    $region75: #{tpu_custom_call.1} parent=1 // pred_check_branch
      %123 = sbr.rel (0) target = $region77
    $region76: #{tpu_custom_call.1} parent=1 // pred_region
      %124 = dma.done [#allocation12], 16
    $region77: #{tpu_custom_call.1} parent=1 // pred_fallthru
      _
    // Predicated region
    $region78: #{tpu_custom_call.1} parent=1 // pred_check
      _
    $region79: #{tpu_custom_call.1} parent=1 // pred_check_branch
      %126 = sbr.rel (0) target = $region81
    $region80: #{tpu_custom_call.1} parent=1 // pred_region
      %127 = dma.done [#allocation12], 16
    $region81: #{tpu_custom_call.1} parent=1 // pred_fallthru
      _
    %v129 = vld [vmem:[%s0] sm:$0xff]
    %v130 = vld [vmem:[%s0 + $0x8] sm:$0xff]
    %vm131 = vcmask 261120
    %v132 = vsel %vm131, %v129, 0.0
    %133 = vadd.xlane.f32.xlu0 %v132
    %v134 = vpop.xlane.xlu0 %133
    %v135 = vsel %vm131, %v130, 0.0
    %136 = vadd.xlane.f32.xlu0 %v135
    %v137 = vpop.xlane.xlu0 %136
    %v138 = vrcp.pop 32.0
    %v139 = vmul.f32 %v134, %v138
    %v140 = vmul.f32 %v137, %v138
    %v141 = vsub.f32 %v129, %v139
    %v142 = vsub.f32 %v130, %v140
    %v143 = vmul.f32 %v141, %v141
    %v144 = vmul.f32 %v142, %v142
    %v145 = vsel %vm131, %v143, 0.0
    %146 = vadd.xlane.f32.xlu0 %v145
    %v147 = vpop.xlane.xlu0 %146
    %v148 = vsel %vm131, %v144, 0.0
    %149 = vadd.xlane.f32.xlu0 %v148
    %v150 = vpop.xlane.xlu0 %149
    %v151 = vmul.f32 %v147, %v138
    %v152 = vmul.f32 %v150, %v138
    %v153 = vadd.f32 %v151, 1e-05
    %v154 = vadd.f32 %v152, 1e-05
    %v155 = vrsqrt.pop %v153
    %v156 = vrsqrt.pop %v154
    %v157 = vmul.f32 %v141, %v155
    %v158 = vmul.f32 %v142, %v156
    %v159 = vld [vmem:[#allocation2] sm:$0x1]
    %v161 = vlaneseq
    %v162 = vshrl.u32 %v161, 7
    %v163 = vsub.s32 0, %v162
    %v164 = vrot.slane %v159, %v163
    %v166 = vmul.f32 %v157, %v164
    %v167 = vmul.f32 %v158, %v164
    %v168 = vld [vmem:[#allocation5] sm:$0x1]
    %v170 = vlaneseq
    %v171 = vshrl.u32 %v170, 7
    %v172 = vsub.s32 0, %v171
    %v173 = vrot.slane %v168, %v172
    %v175 = vadd.f32 %v166, %v173
    %v176 = vadd.f32 %v167, %v173
    %v177 = vpack.c.bf16 %v176, %v175
    %v178 = vld [vmem:[#allocation7] sm:$0xf]
    %v179 = vld [vmem:[#allocation7 + $0x4] sm:$0xf]
    %v180 = vld [vmem:[#allocation7 + $0x8] sm:$0xf]
    %v181 = vld [vmem:[#allocation7 + $0xc] sm:$0xf]
    %v182 = vld [vmem:[#allocation8] sm:$0x1]
    %v184 = vlaneseq
    %v185 = vshrl.u32 %v184, 7
    %v186 = vsub.s32 0, %v185
    %v187 = vrot.slane %v182, %v186
    %v193 = vunpack.c.l.b16 %v178
    %v194 = vunpack.c.l.b16 %v179
    %v195 = vunpack.c.l.b16 %v180
    %v196 = vunpack.c.l.b16 %v181
    %v197 = vpack.c.b16 %v194, %v193
    %v198 = vpack.c.b16 %v196, %v195
    %v202 = vsel %vm131, %v177, 0
    %204 = vmatprep.subr.bf16.mxu0 0
    %205 = vmatpush1.bf16.msra.mxu0 0
    %206 = vmatprep.subr.bf16.mxu0 0
    %207 = vmatpush1.bf16.msra.mxu0 0
    %208 = vmatprep.subr.bf16.mxu0 0
    %209 = vmatpush1.bf16.msra.mxu0 0
    %210 = vmatprep.subr.bf16.mxu0 0
    %211 = vmatpush1.bf16.msra.mxu0 0
    %212 = vmatprep.subr.bf16.mxu0 0
    %213 = vmatpush1.bf16.msra.mxu0 0
    %214 = vmatprep.subr.bf16.mxu0 0
    %215 = vmatpush1.bf16.msra.mxu0 0
    %216 = vmatprep.subr.bf16.mxu0 0
    %217 = vmatpush1.bf16.msra.mxu0 %v198
    %218 = vmatprep.subr.bf16.mxu0 0
    %219 = vmatpush1.bf16.msra.mxu0 %v197
    %220 = vmatprep.subr.bf16.mxu0 0
    %221 = vmatpush2.bf16.msra.mxu0 0
    %222 = vmatprep.subr.bf16.mxu0 0
    %223 = vmatpush2.bf16.msra.mxu0 0
    %224 = vmatprep.subr.bf16.mxu0 0
    %225 = vmatpush2.bf16.msra.mxu0 0
    %226 = vmatprep.subr.bf16.mxu0 0
    %227 = vmatpush2.bf16.msra.mxu0 0
    %228 = vmatprep.subr.bf16.mxu0 0
    %229 = vmatpush2.bf16.msra.mxu0 0
    %230 = vmatprep.subr.bf16.mxu0 0
    %231 = vmatpush2.bf16.msra.mxu0 0
    %232 = vmatprep.subr.bf16.mxu0 0
    %233 = vmatpush2.bf16.msra.mxu0 0
    %234 = vmatprep.subr.bf16.mxu0 0
    %235 = vmatpush2.bf16.msra.mxu0 0
    %236 = vmatprep.mubr.bf16.mxu0 0
    %237 = vmatmul.mubr.bf16.gmra.mxu0 %v202
    %v238 = vpop.f32.mrf.mxu0
    %v239 = vadd.f32 %v187, %v238
    %v240 = vpop.f32.mrf.mxu0
    %v241 = vpop.f32.mrf.mxu0
    %v242 = vadd.f32 %v187, %v241
    %v243 = vpop.f32.mrf.mxu0
    %244 = vdwg.mxu0
    %247 = vrot.lane.b32.xlu0 %v239, 104
    %v248 = vpop.permute.xlu0 %247
    %249 = vrot.lane.b32.xlu0 %v242, 104
    %v250 = vpop.permute.xlu0 %249
    %251 = vrot.lane.b32.xlu0 %v239, 80
    %v252 = vpop.permute.xlu0 %251
    %253 = vrot.lane.b32.xlu0 %v242, 80
    %v254 = vpop.permute.xlu0 %253
    %255 = vrot.lane.b32.xlu0 %v239, 56
    %v256 = vpop.permute.xlu0 %255
    %257 = vrot.lane.b32.xlu0 %v242, 56
    %v258 = vpop.permute.xlu0 %257
    %259 = vrot.lane.b32.xlu0 %v239, 120
    %v260 = vpop.permute.xlu0 %259
    %vm261 = vcmask 64512
    %v262 = vsel %vm261, %v239, 0
    %v264 = vsel %vm261, %v260, 0
    %266 = vmatprep.subr.mxu0 0.0
    %267 = vmatpush1.xpose.msra.mxu0 0.0
    %268 = vmatprep.subr.mxu0 0.0
    %269 = vmatpush1.xpose.msra.mxu0 0.0
    %270 = vmatprep.subr.mxu0 0.0
    %271 = vmatpush1.xpose.msra.mxu0 0.0
    %272 = vmatprep.subr.mxu0 0.0
    %273 = vmatpush1.xpose.msra.mxu0 0.0
    %274 = vmatprep.subr.mxu0 0.0
    %275 = vmatpush1.xpose.msra.mxu0 0.0
    %276 = vmatprep.subr.mxu0 0.0
    %277 = vmatpush1.xpose.msra.mxu0 0.0
    %278 = vmatprep.subr.mxu0 0.0
    %279 = vmatpush1.xpose.msra.mxu0 0.0
    %280 = vmatprep.subr.mxu0 0.0
    %281 = vmatpush1.xpose.msra.mxu0 0.0
    %282 = vmatprep.subr.mxu0 0.0
    %283 = vmatpush1.xpose.msra.mxu0 0.0
    %284 = vmatprep.subr.mxu0 0.0
    %285 = vmatpush1.xpose.msra.mxu0 0.0
    %286 = vmatprep.subr.mxu0 0.0
    %287 = vmatpush1.xpose.msra.mxu0 0.0
    %288 = vmatprep.subr.mxu0 0.0
    %289 = vmatpush1.xpose.msra.mxu0 0.0
    %290 = vmatprep.subr.mxu0 0.0
    %291 = vmatpush1.xpose.msra.mxu0 0.0
    %292 = vmatprep.subr.mxu0 0.0
    %293 = vmatpush1.xpose.msra.mxu0 0.0
    %294 = vmatprep.subr.mxu0 0.0
    %295 = vmatpush1.xpose.msra.mxu0 0.0
    %296 = vmatprep.subr.mxu0 0.0
    %297 = vmatpush1.xpose.msra.mxu0 %v264
    %298 = vmatprep.subr.mxu0 0.0
    %299 = vmatpush2.xpose.msra.mxu0 0.0
    %300 = vmatprep.subr.mxu0 0.0
    %301 = vmatpush2.xpose.msra.mxu0 0.0
    %302 = vmatprep.subr.mxu0 0.0
    %303 = vmatpush2.xpose.msra.mxu0 0.0
    %304 = vmatprep.subr.mxu0 0.0
    %305 = vmatpush2.xpose.msra.mxu0 0.0
    %306 = vmatprep.subr.mxu0 0.0
    %307 = vmatpush2.xpose.msra.mxu0 0.0
    %308 = vmatprep.subr.mxu0 0.0
    %309 = vmatpush2.xpose.msra.mxu0 0.0
    %310 = vmatprep.subr.mxu0 0.0
    %311 = vmatpush2.xpose.msra.mxu0 0.0
    %312 = vmatprep.subr.mxu0 0.0
    %313 = vmatpush2.xpose.msra.mxu0 0.0
    %314 = vmatprep.subr.mxu0 0.0
    %315 = vmatpush2.xpose.msra.mxu0 0.0
    %316 = vmatprep.subr.mxu0 0.0
    %317 = vmatpush2.xpose.msra.mxu0 0.0
    %318 = vmatprep.subr.mxu0 0.0
    %319 = vmatpush2.xpose.msra.mxu0 0.0
    %320 = vmatprep.subr.mxu0 0.0
    %321 = vmatpush2.xpose.msra.mxu0 0.0
    %322 = vmatprep.subr.mxu0 0.0
    %323 = vmatpush2.xpose.msra.mxu0 0.0
    %324 = vmatprep.subr.mxu0 0.0
    %325 = vmatpush2.xpose.msra.mxu0 0.0
    %326 = vmatprep.subr.mxu0 0.0
    %327 = vmatpush2.xpose.msra.mxu0 0.0
    %328 = vmatprep.subr.mxu0 0.0
    %329 = vmatpush2.xpose.msra.mxu0 0.0
    %330 = vmatprep.mubr.f32.mxu0 0.0
    %331 = vmatmul.mubr.f32.gmra.mxu0 %v262
    %v332 = vpop.f32.mrf.mxu0
    %v333 = vadd.f32 0.0, %v332
    %v334 = vpop.f32.mrf.mxu0
    %335 = vdwg.mxu0
    %336 = vrot.lane.b32.xlu0 %v248, 120
    %v337 = vpop.permute.xlu0 %336
    %v338 = vsel %vm261, %v248, 0
    %v340 = vsel %vm261, %v337, 0
    %342 = vmatprep.subr.mxu0 0.0
    %343 = vmatpush1.xpose.msra.mxu0 0.0
    %344 = vmatprep.subr.mxu0 0.0
    %345 = vmatpush1.xpose.msra.mxu0 0.0
    %346 = vmatprep.subr.mxu0 0.0
    %347 = vmatpush1.xpose.msra.mxu0 0.0
    %348 = vmatprep.subr.mxu0 0.0
    %349 = vmatpush1.xpose.msra.mxu0 0.0
    %350 = vmatprep.subr.mxu0 0.0
    %351 = vmatpush1.xpose.msra.mxu0 0.0
    %352 = vmatprep.subr.mxu0 0.0
    %353 = vmatpush1.xpose.msra.mxu0 0.0
    %354 = vmatprep.subr.mxu0 0.0
    %355 = vmatpush1.xpose.msra.mxu0 0.0
    %356 = vmatprep.subr.mxu0 0.0
    %357 = vmatpush1.xpose.msra.mxu0 0.0
    %358 = vmatprep.subr.mxu0 0.0
    %359 = vmatpush1.xpose.msra.mxu0 0.0
    %360 = vmatprep.subr.mxu0 0.0
    %361 = vmatpush1.xpose.msra.mxu0 0.0
    %362 = vmatprep.subr.mxu0 0.0
    %363 = vmatpush1.xpose.msra.mxu0 0.0
    %364 = vmatprep.subr.mxu0 0.0
    %365 = vmatpush1.xpose.msra.mxu0 0.0
    %366 = vmatprep.subr.mxu0 0.0
    %367 = vmatpush1.xpose.msra.mxu0 0.0
    %368 = vmatprep.subr.mxu0 0.0
    %369 = vmatpush1.xpose.msra.mxu0 0.0
    %370 = vmatprep.subr.mxu0 0.0
    %371 = vmatpush1.xpose.msra.mxu0 0.0
    %372 = vmatprep.subr.mxu0 0.0
    %373 = vmatpush1.xpose.msra.mxu0 %v340
    %374 = vmatprep.subr.mxu0 0.0
    %375 = vmatpush2.xpose.msra.mxu0 0.0
    %376 = vmatprep.subr.mxu0 0.0
    %377 = vmatpush2.xpose.msra.mxu0 0.0
    %378 = vmatprep.subr.mxu0 0.0
    %379 = vmatpush2.xpose.msra.mxu0 0.0
    %380 = vmatprep.subr.mxu0 0.0
    %381 = vmatpush2.xpose.msra.mxu0 0.0
    %382 = vmatprep.subr.mxu0 0.0
    %383 = vmatpush2.xpose.msra.mxu0 0.0
    %384 = vmatprep.subr.mxu0 0.0
    %385 = vmatpush2.xpose.msra.mxu0 0.0
    %386 = vmatprep.subr.mxu0 0.0
    %387 = vmatpush2.xpose.msra.mxu0 0.0
    %388 = vmatprep.subr.mxu0 0.0
    %389 = vmatpush2.xpose.msra.mxu0 0.0
    %390 = vmatprep.subr.mxu0 0.0
    %391 = vmatpush2.xpose.msra.mxu0 0.0
    %392 = vmatprep.subr.mxu0 0.0
    %393 = vmatpush2.xpose.msra.mxu0 0.0
    %394 = vmatprep.subr.mxu0 0.0
    %395 = vmatpush2.xpose.msra.mxu0 0.0
    %396 = vmatprep.subr.mxu0 0.0
    %397 = vmatpush2.xpose.msra.mxu0 0.0
    %398 = vmatprep.subr.mxu0 0.0
    %399 = vmatpush2.xpose.msra.mxu0 0.0
    %400 = vmatprep.subr.mxu0 0.0
    %401 = vmatpush2.xpose.msra.mxu0 0.0
    %402 = vmatprep.subr.mxu0 0.0
    %403 = vmatpush2.xpose.msra.mxu0 0.0
    %404 = vmatprep.subr.mxu0 0.0
    %405 = vmatpush2.xpose.msra.mxu0 0.0
    %406 = vmatprep.mubr.f32.mxu0 0.0
    %407 = vmatmul.mubr.f32.gmra.mxu0 %v338
    %v408 = vpop.f32.mrf.mxu0
    %v409 = vadd.f32 0.0, %v408
    %v410 = vpop.f32.mrf.mxu0
    %411 = vdwg.mxu0
    %412 = vrot.lane.b32.xlu0 %v252, 120
    %v413 = vpop.permute.xlu0 %412
    %v414 = vsel %vm261, %v252, 0
    %v416 = vsel %vm261, %v413, 0
    %418 = vmatprep.subr.mxu0 0.0
    %419 = vmatpush1.xpose.msra.mxu0 0.0
    %420 = vmatprep.subr.mxu0 0.0
    %421 = vmatpush1.xpose.msra.mxu0 0.0
    %422 = vmatprep.subr.mxu0 0.0
    %423 = vmatpush1.xpose.msra.mxu0 0.0
    %424 = vmatprep.subr.mxu0 0.0
    %425 = vmatpush1.xpose.msra.mxu0 0.0
    %426 = vmatprep.subr.mxu0 0.0
    %427 = vmatpush1.xpose.msra.mxu0 0.0
    %428 = vmatprep.subr.mxu0 0.0
    %429 = vmatpush1.xpose.msra.mxu0 0.0
    %430 = vmatprep.subr.mxu0 0.0
    %431 = vmatpush1.xpose.msra.mxu0 0.0
    %432 = vmatprep.subr.mxu0 0.0
    %433 = vmatpush1.xpose.msra.mxu0 0.0
    %434 = vmatprep.subr.mxu0 0.0
    %435 = vmatpush1.xpose.msra.mxu0 0.0
    %436 = vmatprep.subr.mxu0 0.0
    %437 = vmatpush1.xpose.msra.mxu0 0.0
    %438 = vmatprep.subr.mxu0 0.0
    %439 = vmatpush1.xpose.msra.mxu0 0.0
    %440 = vmatprep.subr.mxu0 0.0
    %441 = vmatpush1.xpose.msra.mxu0 0.0
    %442 = vmatprep.subr.mxu0 0.0
    %443 = vmatpush1.xpose.msra.mxu0 0.0
    %444 = vmatprep.subr.mxu0 0.0
    %445 = vmatpush1.xpose.msra.mxu0 0.0
    %446 = vmatprep.subr.mxu0 0.0
    %447 = vmatpush1.xpose.msra.mxu0 0.0
    %448 = vmatprep.subr.mxu0 0.0
    %449 = vmatpush1.xpose.msra.mxu0 %v416
    %450 = vmatprep.subr.mxu0 0.0
    %451 = vmatpush2.xpose.msra.mxu0 0.0
    %452 = vmatprep.subr.mxu0 0.0
    %453 = vmatpush2.xpose.msra.mxu0 0.0
    %454 = vmatprep.subr.mxu0 0.0
    %455 = vmatpush2.xpose.msra.mxu0 0.0
    %456 = vmatprep.subr.mxu0 0.0
    %457 = vmatpush2.xpose.msra.mxu0 0.0
    %458 = vmatprep.subr.mxu0 0.0
    %459 = vmatpush2.xpose.msra.mxu0 0.0
    %460 = vmatprep.subr.mxu0 0.0
    %461 = vmatpush2.xpose.msra.mxu0 0.0
    %462 = vmatprep.subr.mxu0 0.0
    %463 = vmatpush2.xpose.msra.mxu0 0.0
    %464 = vmatprep.subr.mxu0 0.0
    %465 = vmatpush2.xpose.msra.mxu0 0.0
    %466 = vmatprep.subr.mxu0 0.0
    %467 = vmatpush2.xpose.msra.mxu0 0.0
    %468 = vmatprep.subr.mxu0 0.0
    %469 = vmatpush2.xpose.msra.mxu0 0.0
    %470 = vmatprep.subr.mxu0 0.0
    %471 = vmatpush2.xpose.msra.mxu0 0.0
    %472 = vmatprep.subr.mxu0 0.0
    %473 = vmatpush2.xpose.msra.mxu0 0.0
    %474 = vmatprep.subr.mxu0 0.0
    %475 = vmatpush2.xpose.msra.mxu0 0.0
    %476 = vmatprep.subr.mxu0 0.0
    %477 = vmatpush2.xpose.msra.mxu0 0.0
    %478 = vmatprep.subr.mxu0 0.0
    %479 = vmatpush2.xpose.msra.mxu0 0.0
    %480 = vmatprep.subr.mxu0 0.0
    %481 = vmatpush2.xpose.msra.mxu0 0.0
    %482 = vmatprep.mubr.f32.mxu0 0.0
    %483 = vmatmul.mubr.f32.gmra.mxu0 %v414
    %v484 = vpop.f32.mrf.mxu0
    %v485 = vadd.f32 0.0, %v484
    %v486 = vpop.f32.mrf.mxu0
    %487 = vdwg.mxu0
    %488 = vrot.lane.b32.xlu0 %v256, 120
    %v489 = vpop.permute.xlu0 %488
    %v490 = vsel %vm261, %v256, 0
    %v492 = vsel %vm261, %v489, 0
    %494 = vmatprep.subr.mxu0 0.0
    %495 = vmatpush1.xpose.msra.mxu0 0.0
    %496 = vmatprep.subr.mxu0 0.0
    %497 = vmatpush1.xpose.msra.mxu0 0.0
    %498 = vmatprep.subr.mxu0 0.0
    %499 = vmatpush1.xpose.msra.mxu0 0.0
    %500 = vmatprep.subr.mxu0 0.0
    %501 = vmatpush1.xpose.msra.mxu0 0.0
    %502 = vmatprep.subr.mxu0 0.0
    %503 = vmatpush1.xpose.msra.mxu0 0.0
    %504 = vmatprep.subr.mxu0 0.0
    %505 = vmatpush1.xpose.msra.mxu0 0.0
    %506 = vmatprep.subr.mxu0 0.0
    %507 = vmatpush1.xpose.msra.mxu0 0.0
    %508 = vmatprep.subr.mxu0 0.0
    %509 = vmatpush1.xpose.msra.mxu0 0.0
    %510 = vmatprep.subr.mxu0 0.0
    %511 = vmatpush1.xpose.msra.mxu0 0.0
    %512 = vmatprep.subr.mxu0 0.0
    %513 = vmatpush1.xpose.msra.mxu0 0.0
    %514 = vmatprep.subr.mxu0 0.0
    %515 = vmatpush1.xpose.msra.mxu0 0.0
    %516 = vmatprep.subr.mxu0 0.0
    %517 = vmatpush1.xpose.msra.mxu0 0.0
    %518 = vmatprep.subr.mxu0 0.0
    %519 = vmatpush1.xpose.msra.mxu0 0.0
    %520 = vmatprep.subr.mxu0 0.0
    %521 = vmatpush1.xpose.msra.mxu0 0.0
    %522 = vmatprep.subr.mxu0 0.0
    %523 = vmatpush1.xpose.msra.mxu0 0.0
    %524 = vmatprep.subr.mxu0 0.0
    %525 = vmatpush1.xpose.msra.mxu0 %v492
    %526 = vmatprep.subr.mxu0 0.0
    %527 = vmatpush2.xpose.msra.mxu0 0.0
    %528 = vmatprep.subr.mxu0 0.0
    %529 = vmatpush2.xpose.msra.mxu0 0.0
    %530 = vmatprep.subr.mxu0 0.0
    %531 = vmatpush2.xpose.msra.mxu0 0.0
    %532 = vmatprep.subr.mxu0 0.0
    %533 = vmatpush2.xpose.msra.mxu0 0.0
    %534 = vmatprep.subr.mxu0 0.0
    %535 = vmatpush2.xpose.msra.mxu0 0.0
    %536 = vmatprep.subr.mxu0 0.0
    %537 = vmatpush2.xpose.msra.mxu0 0.0
    %538 = vmatprep.subr.mxu0 0.0
    %539 = vmatpush2.xpose.msra.mxu0 0.0
    %540 = vmatprep.subr.mxu0 0.0
    %541 = vmatpush2.xpose.msra.mxu0 0.0
    %542 = vmatprep.subr.mxu0 0.0
    %543 = vmatpush2.xpose.msra.mxu0 0.0
    %544 = vmatprep.subr.mxu0 0.0
    %545 = vmatpush2.xpose.msra.mxu0 0.0
    %546 = vmatprep.subr.mxu0 0.0
    %547 = vmatpush2.xpose.msra.mxu0 0.0
    %548 = vmatprep.subr.mxu0 0.0
    %549 = vmatpush2.xpose.msra.mxu0 0.0
    %550 = vmatprep.subr.mxu0 0.0
    %551 = vmatpush2.xpose.msra.mxu0 0.0
    %552 = vmatprep.subr.mxu0 0.0
    %553 = vmatpush2.xpose.msra.mxu0 0.0
    %554 = vmatprep.subr.mxu0 0.0
    %555 = vmatpush2.xpose.msra.mxu0 0.0
    %556 = vmatprep.subr.mxu0 0.0
    %557 = vmatpush2.xpose.msra.mxu0 0.0
    %558 = vmatprep.mubr.f32.mxu0 0.0
    %559 = vmatmul.mubr.f32.gmra.mxu0 %v490
    %v560 = vpop.f32.mrf.mxu0
    %v561 = vadd.f32 0.0, %v560
    %v562 = vpop.f32.mrf.mxu0
    %563 = vdwg.mxu0
    %564 = vrot.lane.b32.xlu0 %v242, 120
    %v565 = vpop.permute.xlu0 %564
    %v566 = vsel %vm261, %v242, 0
    %v568 = vsel %vm261, %v565, 0
    %570 = vmatprep.subr.mxu0 0.0
    %571 = vmatpush1.xpose.msra.mxu0 0.0
    %572 = vmatprep.subr.mxu0 0.0
    %573 = vmatpush1.xpose.msra.mxu0 0.0
    %574 = vmatprep.subr.mxu0 0.0
    %575 = vmatpush1.xpose.msra.mxu0 0.0
    %576 = vmatprep.subr.mxu0 0.0
    %577 = vmatpush1.xpose.msra.mxu0 0.0
    %578 = vmatprep.subr.mxu0 0.0
    %579 = vmatpush1.xpose.msra.mxu0 0.0
    %580 = vmatprep.subr.mxu0 0.0
    %581 = vmatpush1.xpose.msra.mxu0 0.0
    %582 = vmatprep.subr.mxu0 0.0
    %583 = vmatpush1.xpose.msra.mxu0 0.0
    %584 = vmatprep.subr.mxu0 0.0
    %585 = vmatpush1.xpose.msra.mxu0 0.0
    %586 = vmatprep.subr.mxu0 0.0
    %587 = vmatpush1.xpose.msra.mxu0 0.0
    %588 = vmatprep.subr.mxu0 0.0
    %589 = vmatpush1.xpose.msra.mxu0 0.0
    %590 = vmatprep.subr.mxu0 0.0
    %591 = vmatpush1.xpose.msra.mxu0 0.0
    %592 = vmatprep.subr.mxu0 0.0
    %593 = vmatpush1.xpose.msra.mxu0 0.0
    %594 = vmatprep.subr.mxu0 0.0
    %595 = vmatpush1.xpose.msra.mxu0 0.0
    %596 = vmatprep.subr.mxu0 0.0
    %597 = vmatpush1.xpose.msra.mxu0 0.0
    %598 = vmatprep.subr.mxu0 0.0
    %599 = vmatpush1.xpose.msra.mxu0 0.0
    %600 = vmatprep.subr.mxu0 0.0
    %601 = vmatpush1.xpose.msra.mxu0 %v568
    %602 = vmatprep.subr.mxu0 0.0
    %603 = vmatpush2.xpose.msra.mxu0 0.0
    %604 = vmatprep.subr.mxu0 0.0
    %605 = vmatpush2.xpose.msra.mxu0 0.0
    %606 = vmatprep.subr.mxu0 0.0
    %607 = vmatpush2.xpose.msra.mxu0 0.0
    %608 = vmatprep.subr.mxu0 0.0
    %609 = vmatpush2.xpose.msra.mxu0 0.0
    %610 = vmatprep.subr.mxu0 0.0
    %611 = vmatpush2.xpose.msra.mxu0 0.0
    %612 = vmatprep.subr.mxu0 0.0
    %613 = vmatpush2.xpose.msra.mxu0 0.0
    %614 = vmatprep.subr.mxu0 0.0
    %615 = vmatpush2.xpose.msra.mxu0 0.0
    %616 = vmatprep.subr.mxu0 0.0
    %617 = vmatpush2.xpose.msra.mxu0 0.0
    %618 = vmatprep.subr.mxu0 0.0
    %619 = vmatpush2.xpose.msra.mxu0 0.0
    %620 = vmatprep.subr.mxu0 0.0
    %621 = vmatpush2.xpose.msra.mxu0 0.0
    %622 = vmatprep.subr.mxu0 0.0
    %623 = vmatpush2.xpose.msra.mxu0 0.0
    %624 = vmatprep.subr.mxu0 0.0
    %625 = vmatpush2.xpose.msra.mxu0 0.0
    %626 = vmatprep.subr.mxu0 0.0
    %627 = vmatpush2.xpose.msra.mxu0 0.0
    %628 = vmatprep.subr.mxu0 0.0
    %629 = vmatpush2.xpose.msra.mxu0 0.0
    %630 = vmatprep.subr.mxu0 0.0
    %631 = vmatpush2.xpose.msra.mxu0 0.0
    %632 = vmatprep.subr.mxu0 0.0
    %633 = vmatpush2.xpose.msra.mxu0 0.0
    %634 = vmatprep.mubr.f32.mxu0 0.0
    %635 = vmatmul.mubr.f32.gmra.mxu0 %v566
    %v636 = vpop.f32.mrf.mxu0
    %v637 = vadd.f32 0.0, %v636
    %v638 = vpop.f32.mrf.mxu0
    %639 = vdwg.mxu0
    %640 = vrot.lane.b32.xlu0 %v250, 120
    %v641 = vpop.permute.xlu0 %640
    %v642 = vsel %vm261, %v250, 0
    %v644 = vsel %vm261, %v641, 0
    %646 = vmatprep.subr.mxu0 0.0
    %647 = vmatpush1.xpose.msra.mxu0 0.0
    %648 = vmatprep.subr.mxu0 0.0
    %649 = vmatpush1.xpose.msra.mxu0 0.0
    %650 = vmatprep.subr.mxu0 0.0
    %651 = vmatpush1.xpose.msra.mxu0 0.0
    %652 = vmatprep.subr.mxu0 0.0
    %653 = vmatpush1.xpose.msra.mxu0 0.0
    %654 = vmatprep.subr.mxu0 0.0
    %655 = vmatpush1.xpose.msra.mxu0 0.0
    %656 = vmatprep.subr.mxu0 0.0
    %657 = vmatpush1.xpose.msra.mxu0 0.0
    %658 = vmatprep.subr.mxu0 0.0
    %659 = vmatpush1.xpose.msra.mxu0 0.0
    %660 = vmatprep.subr.mxu0 0.0
    %661 = vmatpush1.xpose.msra.mxu0 0.0
    %662 = vmatprep.subr.mxu0 0.0
    %663 = vmatpush1.xpose.msra.mxu0 0.0
    %664 = vmatprep.subr.mxu0 0.0
    %665 = vmatpush1.xpose.msra.mxu0 0.0
    %666 = vmatprep.subr.mxu0 0.0
    %667 = vmatpush1.xpose.msra.mxu0 0.0
    %668 = vmatprep.subr.mxu0 0.0
    %669 = vmatpush1.xpose.msra.mxu0 0.0
    %670 = vmatprep.subr.mxu0 0.0
    %671 = vmatpush1.xpose.msra.mxu0 0.0
    %672 = vmatprep.subr.mxu0 0.0
    %673 = vmatpush1.xpose.msra.mxu0 0.0
    %674 = vmatprep.subr.mxu0 0.0
    %675 = vmatpush1.xpose.msra.mxu0 0.0
    %676 = vmatprep.subr.mxu0 0.0
    %677 = vmatpush1.xpose.msra.mxu0 %v644
    %678 = vmatprep.subr.mxu0 0.0
    %679 = vmatpush2.xpose.msra.mxu0 0.0
    %680 = vmatprep.subr.mxu0 0.0
    %681 = vmatpush2.xpose.msra.mxu0 0.0
    %682 = vmatprep.subr.mxu0 0.0
    %683 = vmatpush2.xpose.msra.mxu0 0.0
    %684 = vmatprep.subr.mxu0 0.0
    %685 = vmatpush2.xpose.msra.mxu0 0.0
    %686 = vmatprep.subr.mxu0 0.0
    %687 = vmatpush2.xpose.msra.mxu0 0.0
    %688 = vmatprep.subr.mxu0 0.0
    %689 = vmatpush2.xpose.msra.mxu0 0.0
    %690 = vmatprep.subr.mxu0 0.0
    %691 = vmatpush2.xpose.msra.mxu0 0.0
    %692 = vmatprep.subr.mxu0 0.0
    %693 = vmatpush2.xpose.msra.mxu0 0.0
    %694 = vmatprep.subr.mxu0 0.0
    %695 = vmatpush2.xpose.msra.mxu0 0.0
    %696 = vmatprep.subr.mxu0 0.0
    %697 = vmatpush2.xpose.msra.mxu0 0.0
    %698 = vmatprep.subr.mxu0 0.0
    %699 = vmatpush2.xpose.msra.mxu0 0.0
    %700 = vmatprep.subr.mxu0 0.0
    %701 = vmatpush2.xpose.msra.mxu0 0.0
    %702 = vmatprep.subr.mxu0 0.0
    %703 = vmatpush2.xpose.msra.mxu0 0.0
    %704 = vmatprep.subr.mxu0 0.0
    %705 = vmatpush2.xpose.msra.mxu0 0.0
    %706 = vmatprep.subr.mxu0 0.0
    %707 = vmatpush2.xpose.msra.mxu0 0.0
    %708 = vmatprep.subr.mxu0 0.0
    %709 = vmatpush2.xpose.msra.mxu0 0.0
    %710 = vmatprep.mubr.f32.mxu0 0.0
    %711 = vmatmul.mubr.f32.gmra.mxu0 %v642
    %v712 = vpop.f32.mrf.mxu0
    %v713 = vadd.f32 0.0, %v712
    %v714 = vpop.f32.mrf.mxu0
    %715 = vdwg.mxu0
    %716 = vrot.lane.b32.xlu0 %v254, 120
    %v717 = vpop.permute.xlu0 %716
    %v718 = vsel %vm261, %v254, 0
    %v720 = vsel %vm261, %v717, 0
    %722 = vmatprep.subr.mxu0 0.0
    %723 = vmatpush1.xpose.msra.mxu0 0.0
    %724 = vmatprep.subr.mxu0 0.0
    %725 = vmatpush1.xpose.msra.mxu0 0.0
    %726 = vmatprep.subr.mxu0 0.0
    %727 = vmatpush1.xpose.msra.mxu0 0.0
    %728 = vmatprep.subr.mxu0 0.0
    %729 = vmatpush1.xpose.msra.mxu0 0.0
    %730 = vmatprep.subr.mxu0 0.0
    %731 = vmatpush1.xpose.msra.mxu0 0.0
    %732 = vmatprep.subr.mxu0 0.0
    %733 = vmatpush1.xpose.msra.mxu0 0.0
    %734 = vmatprep.subr.mxu0 0.0
    %735 = vmatpush1.xpose.msra.mxu0 0.0
    %736 = vmatprep.subr.mxu0 0.0
    %737 = vmatpush1.xpose.msra.mxu0 0.0
    %738 = vmatprep.subr.mxu0 0.0
    %739 = vmatpush1.xpose.msra.mxu0 0.0
    %740 = vmatprep.subr.mxu0 0.0
    %741 = vmatpush1.xpose.msra.mxu0 0.0
    %742 = vmatprep.subr.mxu0 0.0
    %743 = vmatpush1.xpose.msra.mxu0 0.0
    %744 = vmatprep.subr.mxu0 0.0
    %745 = vmatpush1.xpose.msra.mxu0 0.0
    %746 = vmatprep.subr.mxu0 0.0
    %747 = vmatpush1.xpose.msra.mxu0 0.0
    %748 = vmatprep.subr.mxu0 0.0
    %749 = vmatpush1.xpose.msra.mxu0 0.0
    %750 = vmatprep.subr.mxu0 0.0
    %751 = vmatpush1.xpose.msra.mxu0 0.0
    %752 = vmatprep.subr.mxu0 0.0
    %753 = vmatpush1.xpose.msra.mxu0 %v720
    %754 = vmatprep.subr.mxu0 0.0
    %755 = vmatpush2.xpose.msra.mxu0 0.0
    %756 = vmatprep.subr.mxu0 0.0
    %757 = vmatpush2.xpose.msra.mxu0 0.0
    %758 = vmatprep.subr.mxu0 0.0
    %759 = vmatpush2.xpose.msra.mxu0 0.0
    %760 = vmatprep.subr.mxu0 0.0
    %761 = vmatpush2.xpose.msra.mxu0 0.0
    %762 = vmatprep.subr.mxu0 0.0
    %763 = vmatpush2.xpose.msra.mxu0 0.0
    %764 = vmatprep.subr.mxu0 0.0
    %765 = vmatpush2.xpose.msra.mxu0 0.0
    %766 = vmatprep.subr.mxu0 0.0
    %767 = vmatpush2.xpose.msra.mxu0 0.0
    %768 = vmatprep.subr.mxu0 0.0
    %769 = vmatpush2.xpose.msra.mxu0 0.0
    %770 = vmatprep.subr.mxu0 0.0
    %771 = vmatpush2.xpose.msra.mxu0 0.0
    %772 = vmatprep.subr.mxu0 0.0
    %773 = vmatpush2.xpose.msra.mxu0 0.0
    %774 = vmatprep.subr.mxu0 0.0
    %775 = vmatpush2.xpose.msra.mxu0 0.0
    %776 = vmatprep.subr.mxu0 0.0
    %777 = vmatpush2.xpose.msra.mxu0 0.0
    %778 = vmatprep.subr.mxu0 0.0
    %779 = vmatpush2.xpose.msra.mxu0 0.0
    %780 = vmatprep.subr.mxu0 0.0
    %781 = vmatpush2.xpose.msra.mxu0 0.0
    %782 = vmatprep.subr.mxu0 0.0
    %783 = vmatpush2.xpose.msra.mxu0 0.0
    %784 = vmatprep.subr.mxu0 0.0
    %785 = vmatpush2.xpose.msra.mxu0 0.0
    %786 = vmatprep.mubr.f32.mxu0 0.0
    %787 = vmatmul.mubr.f32.gmra.mxu0 %v718
    %v788 = vpop.f32.mrf.mxu0
    %v789 = vadd.f32 0.0, %v788
    %v790 = vpop.f32.mrf.mxu0
    %791 = vdwg.mxu0
    %792 = vrot.lane.b32.xlu0 %v258, 120
    %v793 = vpop.permute.xlu0 %792
    %v794 = vsel %vm261, %v258, 0
    %v796 = vsel %vm261, %v793, 0
    %798 = vmatprep.subr.mxu0 0.0
    %799 = vmatpush1.xpose.msra.mxu0 0.0
    %800 = vmatprep.subr.mxu0 0.0
    %801 = vmatpush1.xpose.msra.mxu0 0.0
    %802 = vmatprep.subr.mxu0 0.0
    %803 = vmatpush1.xpose.msra.mxu0 0.0
    %804 = vmatprep.subr.mxu0 0.0
    %805 = vmatpush1.xpose.msra.mxu0 0.0
    %806 = vmatprep.subr.mxu0 0.0
    %807 = vmatpush1.xpose.msra.mxu0 0.0
    %808 = vmatprep.subr.mxu0 0.0
    %809 = vmatpush1.xpose.msra.mxu0 0.0
    %810 = vmatprep.subr.mxu0 0.0
    %811 = vmatpush1.xpose.msra.mxu0 0.0
    %812 = vmatprep.subr.mxu0 0.0
    %813 = vmatpush1.xpose.msra.mxu0 0.0
    %814 = vmatprep.subr.mxu0 0.0
    %815 = vmatpush1.xpose.msra.mxu0 0.0
    %816 = vmatprep.subr.mxu0 0.0
    %817 = vmatpush1.xpose.msra.mxu0 0.0
    %818 = vmatprep.subr.mxu0 0.0
    %819 = vmatpush1.xpose.msra.mxu0 0.0
    %820 = vmatprep.subr.mxu0 0.0
    %821 = vmatpush1.xpose.msra.mxu0 0.0
    %822 = vmatprep.subr.mxu0 0.0
    %823 = vmatpush1.xpose.msra.mxu0 0.0
    %824 = vmatprep.subr.mxu0 0.0
    %825 = vmatpush1.xpose.msra.mxu0 0.0
    %826 = vmatprep.subr.mxu0 0.0
    %827 = vmatpush1.xpose.msra.mxu0 0.0
    %828 = vmatprep.subr.mxu0 0.0
    %829 = vmatpush1.xpose.msra.mxu0 %v796
    %830 = vmatprep.subr.mxu0 0.0
    %831 = vmatpush2.xpose.msra.mxu0 0.0
    %832 = vmatprep.subr.mxu0 0.0
    %833 = vmatpush2.xpose.msra.mxu0 0.0
    %834 = vmatprep.subr.mxu0 0.0
    %835 = vmatpush2.xpose.msra.mxu0 0.0
    %836 = vmatprep.subr.mxu0 0.0
    %837 = vmatpush2.xpose.msra.mxu0 0.0
    %838 = vmatprep.subr.mxu0 0.0
    %839 = vmatpush2.xpose.msra.mxu0 0.0
    %840 = vmatprep.subr.mxu0 0.0
    %841 = vmatpush2.xpose.msra.mxu0 0.0
    %842 = vmatprep.subr.mxu0 0.0
    %843 = vmatpush2.xpose.msra.mxu0 0.0
    %844 = vmatprep.subr.mxu0 0.0
    %845 = vmatpush2.xpose.msra.mxu0 0.0
    %846 = vmatprep.subr.mxu0 0.0
    %847 = vmatpush2.xpose.msra.mxu0 0.0
    %848 = vmatprep.subr.mxu0 0.0
    %849 = vmatpush2.xpose.msra.mxu0 0.0
    %850 = vmatprep.subr.mxu0 0.0
    %851 = vmatpush2.xpose.msra.mxu0 0.0
    %852 = vmatprep.subr.mxu0 0.0
    %853 = vmatpush2.xpose.msra.mxu0 0.0
    %854 = vmatprep.subr.mxu0 0.0
    %855 = vmatpush2.xpose.msra.mxu0 0.0
    %856 = vmatprep.subr.mxu0 0.0
    %857 = vmatpush2.xpose.msra.mxu0 0.0
    %858 = vmatprep.subr.mxu0 0.0
    %859 = vmatpush2.xpose.msra.mxu0 0.0
    %860 = vmatprep.subr.mxu0 0.0
    %861 = vmatpush2.xpose.msra.mxu0 0.0
    %862 = vmatprep.mubr.f32.mxu0 0.0
    %863 = vmatmul.mubr.f32.gmra.mxu0 %v794
    %v864 = vpop.f32.mrf.mxu0
    %v865 = vadd.f32 0.0, %v864
    %v866 = vpop.f32.mrf.mxu0
    %867 = vdwg.mxu0
    %v868 = vsel %vm261, %v333, -inf
    %869 = vmax.xlane.f32.xlu0 %v868
    %v870 = vpop.xlane.xlu0 %869
    %v871 = vsel %vm261, %v409, -inf
    %872 = vmax.xlane.f32.xlu0 %v871
    %v873 = vpop.xlane.xlu0 %872
    %v874 = vsel %vm261, %v485, -inf
    %875 = vmax.xlane.f32.xlu0 %v874
    %v876 = vpop.xlane.xlu0 %875
    %v877 = vsel %vm261, %v561, -inf
    %878 = vmax.xlane.f32.xlu0 %v877
    %v879 = vpop.xlane.xlu0 %878
    %v880 = vsel %vm261, %v637, -inf
    %881 = vmax.xlane.f32.xlu0 %v880
    %v882 = vpop.xlane.xlu0 %881
    %v883 = vsel %vm261, %v713, -inf
    %884 = vmax.xlane.f32.xlu0 %v883
    %v885 = vpop.xlane.xlu0 %884
    %v886 = vsel %vm261, %v789, -inf
    %887 = vmax.xlane.f32.xlu0 %v886
    %v888 = vpop.xlane.xlu0 %887
    %v889 = vsel %vm261, %v865, -inf
    %890 = vmax.xlane.f32.xlu0 %v889
    %v891 = vpop.xlane.xlu0 %890
    %v892 = vsub.f32 %v333, %v870
    %v893 = vsub.f32 %v409, %v873
    %v894 = vsub.f32 %v485, %v876
    %v895 = vsub.f32 %v561, %v879
    %v896 = vsub.f32 %v637, %v882
    %v897 = vsub.f32 %v713, %v885
    %v898 = vsub.f32 %v789, %v888
    %v899 = vsub.f32 %v865, %v891
    %v900 = vmul.f32 %v892, 1.442695
    %v901 = vpow.pop %v900
    %v902 = vmul.f32 %v893, 1.442695
    %v903 = vpow.pop %v902
    %v904 = vmul.f32 %v894, 1.442695
    %v905 = vpow.pop %v904
    %v906 = vmul.f32 %v895, 1.442695
    %v907 = vpow.pop %v906
    %v908 = vmul.f32 %v896, 1.442695
    %v909 = vpow.pop %v908
    %v910 = vmul.f32 %v897, 1.442695
    %v911 = vpow.pop %v910
    %v912 = vmul.f32 %v898, 1.442695
    %v913 = vpow.pop %v912
    %v914 = vmul.f32 %v899, 1.442695
    %v915 = vpow.pop %v914
    %v916 = vsel %vm261, %v901, 0.0
    %917 = vadd.xlane.f32.xlu0 %v916
    %v918 = vpop.xlane.xlu0 %917
    %v919 = vsel %vm261, %v903, 0.0
    %920 = vadd.xlane.f32.xlu0 %v919
    %v921 = vpop.xlane.xlu0 %920
    %v922 = vsel %vm261, %v905, 0.0
    %923 = vadd.xlane.f32.xlu0 %v922
    %v924 = vpop.xlane.xlu0 %923
    %v925 = vsel %vm261, %v907, 0.0
    %926 = vadd.xlane.f32.xlu0 %v925
    %v927 = vpop.xlane.xlu0 %926
    %v928 = vsel %vm261, %v909, 0.0
    %929 = vadd.xlane.f32.xlu0 %v928
    %v930 = vpop.xlane.xlu0 %929
    %v931 = vsel %vm261, %v911, 0.0
    %932 = vadd.xlane.f32.xlu0 %v931
    %v933 = vpop.xlane.xlu0 %932
    %v934 = vsel %vm261, %v913, 0.0
    %935 = vadd.xlane.f32.xlu0 %v934
    %v936 = vpop.xlane.xlu0 %935
    %v937 = vsel %vm261, %v915, 0.0
    %938 = vadd.xlane.f32.xlu0 %v937
    %v939 = vpop.xlane.xlu0 %938
    %v940 = vrcp.pop %v918
    %v941 = vrcp.pop %v921
    %v942 = vrcp.pop %v924
    %v943 = vrcp.pop %v927
    %v944 = vrcp.pop %v930
    %v945 = vrcp.pop %v933
    %v946 = vrcp.pop %v936
    %v947 = vrcp.pop %v939
    %v948 = vmul.f32 %v901, %v940
    %v949 = vmul.f32 %v903, %v941
    %v950 = vmul.f32 %v905, %v942
    %v951 = vmul.f32 %v907, %v943
    %v952 = vmul.f32 %v909, %v944
    %v953 = vmul.f32 %v911, %v945
    %v954 = vmul.f32 %v913, %v946
    %v955 = vmul.f32 %v915, %v947
    %956 = vrot.lane.b32.xlu0 %v239, 112
    %v957 = vpop.permute.xlu0 %956
    %v960 = vsel %vm261, %v948, 0
    %962 = vmatprep.subr.mxu0 0.0
    %963 = vmatpush1.msra.mxu0 0.0
    %964 = vmatprep.subr.mxu0 0.0
    %965 = vmatpush1.msra.mxu0 0.0
    %966 = vmatprep.subr.mxu0 0.0
    %967 = vmatpush1.msra.mxu0 0.0
    %968 = vmatprep.subr.mxu0 0.0
    %969 = vmatpush1.msra.mxu0 0.0
    %970 = vmatprep.subr.mxu0 0.0
    %971 = vmatpush1.msra.mxu0 0.0
    %972 = vmatprep.subr.mxu0 0.0
    %973 = vmatpush1.msra.mxu0 0.0
    %974 = vmatprep.subr.mxu0 0.0
    %975 = vmatpush1.msra.mxu0 0.0
    %976 = vmatprep.subr.mxu0 0.0
    %977 = vmatpush1.msra.mxu0 0.0
    %978 = vmatprep.subr.mxu0 0.0
    %979 = vmatpush1.msra.mxu0 0.0
    %980 = vmatprep.subr.mxu0 0.0
    %981 = vmatpush1.msra.mxu0 0.0
    %982 = vmatprep.subr.mxu0 0.0
    %983 = vmatpush1.msra.mxu0 0.0
    %984 = vmatprep.subr.mxu0 0.0
    %985 = vmatpush1.msra.mxu0 0.0
    %986 = vmatprep.subr.mxu0 0.0
    %987 = vmatpush1.msra.mxu0 0.0
    %988 = vmatprep.subr.mxu0 0.0
    %989 = vmatpush1.msra.mxu0 0.0
    %990 = vmatprep.subr.mxu0 0.0
    %991 = vmatpush1.msra.mxu0 0.0
    %992 = vmatprep.subr.mxu0 0.0
    %993 = vmatpush1.msra.mxu0 %v957
    %994 = vmatprep.subr.mxu0 0.0
    %995 = vmatpush2.msra.mxu0 0.0
    %996 = vmatprep.subr.mxu0 0.0
    %997 = vmatpush2.msra.mxu0 0.0
    %998 = vmatprep.subr.mxu0 0.0
    %999 = vmatpush2.msra.mxu0 0.0
    %1000 = vmatprep.subr.mxu0 0.0
    %1001 = vmatpush2.msra.mxu0 0.0
    %1002 = vmatprep.subr.mxu0 0.0
    %1003 = vmatpush2.msra.mxu0 0.0
    %1004 = vmatprep.subr.mxu0 0.0
    %1005 = vmatpush2.msra.mxu0 0.0
    %1006 = vmatprep.subr.mxu0 0.0
    %1007 = vmatpush2.msra.mxu0 0.0
    %1008 = vmatprep.subr.mxu0 0.0
    %1009 = vmatpush2.msra.mxu0 0.0
    %1010 = vmatprep.subr.mxu0 0.0
    %1011 = vmatpush2.msra.mxu0 0.0
    %1012 = vmatprep.subr.mxu0 0.0
    %1013 = vmatpush2.msra.mxu0 0.0
    %1014 = vmatprep.subr.mxu0 0.0
    %1015 = vmatpush2.msra.mxu0 0.0
    %1016 = vmatprep.subr.mxu0 0.0
    %1017 = vmatpush2.msra.mxu0 0.0
    %1018 = vmatprep.subr.mxu0 0.0
    %1019 = vmatpush2.msra.mxu0 0.0
    %1020 = vmatprep.subr.mxu0 0.0
    %1021 = vmatpush2.msra.mxu0 0.0
    %1022 = vmatprep.subr.mxu0 0.0
    %1023 = vmatpush2.msra.mxu0 0.0
    %1024 = vmatprep.subr.mxu0 0.0
    %1025 = vmatpush2.msra.mxu0 0.0
    %1026 = vmatprep.mubr.f32.mxu0 0.0
    %1027 = vmatmul.mubr.f32.gmra.mxu0 %v960
    %v1028 = vpop.f32.mrf.mxu0
    %v1029 = vadd.f32 0.0, %v1028
    %v1030 = vpop.f32.mrf.mxu0
    %1031 = vdwg.mxu0
    %1032 = vrot.lane.b32.xlu0 %v248, 112
    %v1033 = vpop.permute.xlu0 %1032
    %v1036 = vsel %vm261, %v949, 0
    %1038 = vmatprep.subr.mxu0 0.0
    %1039 = vmatpush1.msra.mxu0 0.0
    %1040 = vmatprep.subr.mxu0 0.0
    %1041 = vmatpush1.msra.mxu0 0.0
    %1042 = vmatprep.subr.mxu0 0.0
    %1043 = vmatpush1.msra.mxu0 0.0
    %1044 = vmatprep.subr.mxu0 0.0
    %1045 = vmatpush1.msra.mxu0 0.0
    %1046 = vmatprep.subr.mxu0 0.0
    %1047 = vmatpush1.msra.mxu0 0.0
    %1048 = vmatprep.subr.mxu0 0.0
    %1049 = vmatpush1.msra.mxu0 0.0
    %1050 = vmatprep.subr.mxu0 0.0
    %1051 = vmatpush1.msra.mxu0 0.0
    %1052 = vmatprep.subr.mxu0 0.0
    %1053 = vmatpush1.msra.mxu0 0.0
    %1054 = vmatprep.subr.mxu0 0.0
    %1055 = vmatpush1.msra.mxu0 0.0
    %1056 = vmatprep.subr.mxu0 0.0
    %1057 = vmatpush1.msra.mxu0 0.0
    %1058 = vmatprep.subr.mxu0 0.0
    %1059 = vmatpush1.msra.mxu0 0.0
    %1060 = vmatprep.subr.mxu0 0.0
    %1061 = vmatpush1.msra.mxu0 0.0
    %1062 = vmatprep.subr.mxu0 0.0
    %1063 = vmatpush1.msra.mxu0 0.0
    %1064 = vmatprep.subr.mxu0 0.0
    %1065 = vmatpush1.msra.mxu0 0.0
    %1066 = vmatprep.subr.mxu0 0.0
    %1067 = vmatpush1.msra.mxu0 0.0
    %1068 = vmatprep.subr.mxu0 0.0
    %1069 = vmatpush1.msra.mxu0 %v1033
    %1070 = vmatprep.subr.mxu0 0.0
    %1071 = vmatpush2.msra.mxu0 0.0
    %1072 = vmatprep.subr.mxu0 0.0
    %1073 = vmatpush2.msra.mxu0 0.0
    %1074 = vmatprep.subr.mxu0 0.0
    %1075 = vmatpush2.msra.mxu0 0.0
    %1076 = vmatprep.subr.mxu0 0.0
    %1077 = vmatpush2.msra.mxu0 0.0
    %1078 = vmatprep.subr.mxu0 0.0
    %1079 = vmatpush2.msra.mxu0 0.0
    %1080 = vmatprep.subr.mxu0 0.0
    %1081 = vmatpush2.msra.mxu0 0.0
    %1082 = vmatprep.subr.mxu0 0.0
    %1083 = vmatpush2.msra.mxu0 0.0
    %1084 = vmatprep.subr.mxu0 0.0
    %1085 = vmatpush2.msra.mxu0 0.0
    %1086 = vmatprep.subr.mxu0 0.0
    %1087 = vmatpush2.msra.mxu0 0.0
    %1088 = vmatprep.subr.mxu0 0.0
    %1089 = vmatpush2.msra.mxu0 0.0
    %1090 = vmatprep.subr.mxu0 0.0
    %1091 = vmatpush2.msra.mxu0 0.0
    %1092 = vmatprep.subr.mxu0 0.0
    %1093 = vmatpush2.msra.mxu0 0.0
    %1094 = vmatprep.subr.mxu0 0.0
    %1095 = vmatpush2.msra.mxu0 0.0
    %1096 = vmatprep.subr.mxu0 0.0
    %1097 = vmatpush2.msra.mxu0 0.0
    %1098 = vmatprep.subr.mxu0 0.0
    %1099 = vmatpush2.msra.mxu0 0.0
    %1100 = vmatprep.subr.mxu0 0.0
    %1101 = vmatpush2.msra.mxu0 0.0
    %1102 = vmatprep.mubr.f32.mxu0 0.0
    %1103 = vmatmul.mubr.f32.gmra.mxu0 %v1036
    %v1104 = vpop.f32.mrf.mxu0
    %v1105 = vadd.f32 0.0, %v1104
    %v1106 = vpop.f32.mrf.mxu0
    %1107 = vdwg.mxu0
    %1108 = vrot.lane.b32.xlu0 %v252, 112
    %v1109 = vpop.permute.xlu0 %1108
    %v1112 = vsel %vm261, %v950, 0
    %1114 = vmatprep.subr.mxu0 0.0
    %1115 = vmatpush1.msra.mxu0 0.0
    %1116 = vmatprep.subr.mxu0 0.0
    %1117 = vmatpush1.msra.mxu0 0.0
    %1118 = vmatprep.subr.mxu0 0.0
    %1119 = vmatpush1.msra.mxu0 0.0
    %1120 = vmatprep.subr.mxu0 0.0
    %1121 = vmatpush1.msra.mxu0 0.0
    %1122 = vmatprep.subr.mxu0 0.0
    %1123 = vmatpush1.msra.mxu0 0.0
    %1124 = vmatprep.subr.mxu0 0.0
    %1125 = vmatpush1.msra.mxu0 0.0
    %1126 = vmatprep.subr.mxu0 0.0
    %1127 = vmatpush1.msra.mxu0 0.0
    %1128 = vmatprep.subr.mxu0 0.0
    %1129 = vmatpush1.msra.mxu0 0.0
    %1130 = vmatprep.subr.mxu0 0.0
    %1131 = vmatpush1.msra.mxu0 0.0
    %1132 = vmatprep.subr.mxu0 0.0
    %1133 = vmatpush1.msra.mxu0 0.0
    %1134 = vmatprep.subr.mxu0 0.0
    %1135 = vmatpush1.msra.mxu0 0.0
    %1136 = vmatprep.subr.mxu0 0.0
    %1137 = vmatpush1.msra.mxu0 0.0
    %1138 = vmatprep.subr.mxu0 0.0
    %1139 = vmatpush1.msra.mxu0 0.0
    %1140 = vmatprep.subr.mxu0 0.0
    %1141 = vmatpush1.msra.mxu0 0.0
    %1142 = vmatprep.subr.mxu0 0.0
    %1143 = vmatpush1.msra.mxu0 0.0
    %1144 = vmatprep.subr.mxu0 0.0
    %1145 = vmatpush1.msra.mxu0 %v1109
    %1146 = vmatprep.subr.mxu0 0.0
    %1147 = vmatpush2.msra.mxu0 0.0
    %1148 = vmatprep.subr.mxu0 0.0
    %1149 = vmatpush2.msra.mxu0 0.0
    %1150 = vmatprep.subr.mxu0 0.0
    %1151 = vmatpush2.msra.mxu0 0.0
    %1152 = vmatprep.subr.mxu0 0.0
    %1153 = vmatpush2.msra.mxu0 0.0
    %1154 = vmatprep.subr.mxu0 0.0
    %1155 = vmatpush2.msra.mxu0 0.0
    %1156 = vmatprep.subr.mxu0 0.0
    %1157 = vmatpush2.msra.mxu0 0.0
    %1158 = vmatprep.subr.mxu0 0.0
    %1159 = vmatpush2.msra.mxu0 0.0
    %1160 = vmatprep.subr.mxu0 0.0
    %1161 = vmatpush2.msra.mxu0 0.0
    %1162 = vmatprep.subr.mxu0 0.0
    %1163 = vmatpush2.msra.mxu0 0.0
    %1164 = vmatprep.subr.mxu0 0.0
    %1165 = vmatpush2.msra.mxu0 0.0
    %1166 = vmatprep.subr.mxu0 0.0
    %1167 = vmatpush2.msra.mxu0 0.0
    %1168 = vmatprep.subr.mxu0 0.0
    %1169 = vmatpush2.msra.mxu0 0.0
    %1170 = vmatprep.subr.mxu0 0.0
    %1171 = vmatpush2.msra.mxu0 0.0
    %1172 = vmatprep.subr.mxu0 0.0
    %1173 = vmatpush2.msra.mxu0 0.0
    %1174 = vmatprep.subr.mxu0 0.0
    %1175 = vmatpush2.msra.mxu0 0.0
    %1176 = vmatprep.subr.mxu0 0.0
    %1177 = vmatpush2.msra.mxu0 0.0
    %1178 = vmatprep.mubr.f32.mxu0 0.0
    %1179 = vmatmul.mubr.f32.gmra.mxu0 %v1112
    %v1180 = vpop.f32.mrf.mxu0
    %v1181 = vadd.f32 0.0, %v1180
    %v1182 = vpop.f32.mrf.mxu0
    %1183 = vdwg.mxu0
    %1184 = vrot.lane.b32.xlu0 %v256, 112
    %v1185 = vpop.permute.xlu0 %1184
    %v1188 = vsel %vm261, %v951, 0
    %1190 = vmatprep.subr.mxu0 0.0
    %1191 = vmatpush1.msra.mxu0 0.0
    %1192 = vmatprep.subr.mxu0 0.0
    %1193 = vmatpush1.msra.mxu0 0.0
    %1194 = vmatprep.subr.mxu0 0.0
    %1195 = vmatpush1.msra.mxu0 0.0
    %1196 = vmatprep.subr.mxu0 0.0
    %1197 = vmatpush1.msra.mxu0 0.0
    %1198 = vmatprep.subr.mxu0 0.0
    %1199 = vmatpush1.msra.mxu0 0.0
    %1200 = vmatprep.subr.mxu0 0.0
    %1201 = vmatpush1.msra.mxu0 0.0
    %1202 = vmatprep.subr.mxu0 0.0
    %1203 = vmatpush1.msra.mxu0 0.0
    %1204 = vmatprep.subr.mxu0 0.0
    %1205 = vmatpush1.msra.mxu0 0.0
    %1206 = vmatprep.subr.mxu0 0.0
    %1207 = vmatpush1.msra.mxu0 0.0
    %1208 = vmatprep.subr.mxu0 0.0
    %1209 = vmatpush1.msra.mxu0 0.0
    %1210 = vmatprep.subr.mxu0 0.0
    %1211 = vmatpush1.msra.mxu0 0.0
    %1212 = vmatprep.subr.mxu0 0.0
    %1213 = vmatpush1.msra.mxu0 0.0
    %1214 = vmatprep.subr.mxu0 0.0
    %1215 = vmatpush1.msra.mxu0 0.0
    %1216 = vmatprep.subr.mxu0 0.0
    %1217 = vmatpush1.msra.mxu0 0.0
    %1218 = vmatprep.subr.mxu0 0.0
    %1219 = vmatpush1.msra.mxu0 0.0
    %1220 = vmatprep.subr.mxu0 0.0
    %1221 = vmatpush1.msra.mxu0 %v1185
    %1222 = vmatprep.subr.mxu0 0.0
    %1223 = vmatpush2.msra.mxu0 0.0
    %1224 = vmatprep.subr.mxu0 0.0
    %1225 = vmatpush2.msra.mxu0 0.0
    %1226 = vmatprep.subr.mxu0 0.0
    %1227 = vmatpush2.msra.mxu0 0.0
    %1228 = vmatprep.subr.mxu0 0.0
    %1229 = vmatpush2.msra.mxu0 0.0
    %1230 = vmatprep.subr.mxu0 0.0
    %1231 = vmatpush2.msra.mxu0 0.0
    %1232 = vmatprep.subr.mxu0 0.0
    %1233 = vmatpush2.msra.mxu0 0.0
    %1234 = vmatprep.subr.mxu0 0.0
    %1235 = vmatpush2.msra.mxu0 0.0
    %1236 = vmatprep.subr.mxu0 0.0
    %1237 = vmatpush2.msra.mxu0 0.0
    %1238 = vmatprep.subr.mxu0 0.0
    %1239 = vmatpush2.msra.mxu0 0.0
    %1240 = vmatprep.subr.mxu0 0.0
    %1241 = vmatpush2.msra.mxu0 0.0
    %1242 = vmatprep.subr.mxu0 0.0
    %1243 = vmatpush2.msra.mxu0 0.0
    %1244 = vmatprep.subr.mxu0 0.0
    %1245 = vmatpush2.msra.mxu0 0.0
    %1246 = vmatprep.subr.mxu0 0.0
    %1247 = vmatpush2.msra.mxu0 0.0
    %1248 = vmatprep.subr.mxu0 0.0
    %1249 = vmatpush2.msra.mxu0 0.0
    %1250 = vmatprep.subr.mxu0 0.0
    %1251 = vmatpush2.msra.mxu0 0.0
    %1252 = vmatprep.subr.mxu0 0.0
    %1253 = vmatpush2.msra.mxu0 0.0
    %1254 = vmatprep.mubr.f32.mxu0 0.0
    %1255 = vmatmul.mubr.f32.gmra.mxu0 %v1188
    %v1256 = vpop.f32.mrf.mxu0
    %v1257 = vadd.f32 0.0, %v1256
    %v1258 = vpop.f32.mrf.mxu0
    %1259 = vdwg.mxu0
    %1260 = vrot.lane.b32.xlu0 %v242, 112
    %v1261 = vpop.permute.xlu0 %1260
    %v1264 = vsel %vm261, %v952, 0
    %1266 = vmatprep.subr.mxu0 0.0
    %1267 = vmatpush1.msra.mxu0 0.0
    %1268 = vmatprep.subr.mxu0 0.0
    %1269 = vmatpush1.msra.mxu0 0.0
    %1270 = vmatprep.subr.mxu0 0.0
    %1271 = vmatpush1.msra.mxu0 0.0
    %1272 = vmatprep.subr.mxu0 0.0
    %1273 = vmatpush1.msra.mxu0 0.0
    %1274 = vmatprep.subr.mxu0 0.0
    %1275 = vmatpush1.msra.mxu0 0.0
    %1276 = vmatprep.subr.mxu0 0.0
    %1277 = vmatpush1.msra.mxu0 0.0
    %1278 = vmatprep.subr.mxu0 0.0
    %1279 = vmatpush1.msra.mxu0 0.0
    %1280 = vmatprep.subr.mxu0 0.0
    %1281 = vmatpush1.msra.mxu0 0.0
    %1282 = vmatprep.subr.mxu0 0.0
    %1283 = vmatpush1.msra.mxu0 0.0
    %1284 = vmatprep.subr.mxu0 0.0
    %1285 = vmatpush1.msra.mxu0 0.0
    %1286 = vmatprep.subr.mxu0 0.0
    %1287 = vmatpush1.msra.mxu0 0.0
    %1288 = vmatprep.subr.mxu0 0.0
    %1289 = vmatpush1.msra.mxu0 0.0
    %1290 = vmatprep.subr.mxu0 0.0
    %1291 = vmatpush1.msra.mxu0 0.0
    %1292 = vmatprep.subr.mxu0 0.0
    %1293 = vmatpush1.msra.mxu0 0.0
    %1294 = vmatprep.subr.mxu0 0.0
    %1295 = vmatpush1.msra.mxu0 0.0
    %1296 = vmatprep.subr.mxu0 0.0
    %1297 = vmatpush1.msra.mxu0 %v1261
    %1298 = vmatprep.subr.mxu0 0.0
    %1299 = vmatpush2.msra.mxu0 0.0
    %1300 = vmatprep.subr.mxu0 0.0
    %1301 = vmatpush2.msra.mxu0 0.0
    %1302 = vmatprep.subr.mxu0 0.0
    %1303 = vmatpush2.msra.mxu0 0.0
    %1304 = vmatprep.subr.mxu0 0.0
    %1305 = vmatpush2.msra.mxu0 0.0
    %1306 = vmatprep.subr.mxu0 0.0
    %1307 = vmatpush2.msra.mxu0 0.0
    %1308 = vmatprep.subr.mxu0 0.0
    %1309 = vmatpush2.msra.mxu0 0.0
    %1310 = vmatprep.subr.mxu0 0.0
    %1311 = vmatpush2.msra.mxu0 0.0
    %1312 = vmatprep.subr.mxu0 0.0
    %1313 = vmatpush2.msra.mxu0 0.0
    %1314 = vmatprep.subr.mxu0 0.0
    %1315 = vmatpush2.msra.mxu0 0.0
    %1316 = vmatprep.subr.mxu0 0.0
    %1317 = vmatpush2.msra.mxu0 0.0
    %1318 = vmatprep.subr.mxu0 0.0
    %1319 = vmatpush2.msra.mxu0 0.0
    %1320 = vmatprep.subr.mxu0 0.0
    %1321 = vmatpush2.msra.mxu0 0.0
    %1322 = vmatprep.subr.mxu0 0.0
    %1323 = vmatpush2.msra.mxu0 0.0
    %1324 = vmatprep.subr.mxu0 0.0
    %1325 = vmatpush2.msra.mxu0 0.0
    %1326 = vmatprep.subr.mxu0 0.0
    %1327 = vmatpush2.msra.mxu0 0.0
    %1328 = vmatprep.subr.mxu0 0.0
    %1329 = vmatpush2.msra.mxu0 0.0
    %1330 = vmatprep.mubr.f32.mxu0 0.0
    %1331 = vmatmul.mubr.f32.gmra.mxu0 %v1264
    %v1332 = vpop.f32.mrf.mxu0
    %v1333 = vadd.f32 0.0, %v1332
    %v1334 = vpop.f32.mrf.mxu0
    %1335 = vdwg.mxu0
    %1336 = vrot.lane.b32.xlu0 %v250, 112
    %v1337 = vpop.permute.xlu0 %1336
    %v1340 = vsel %vm261, %v953, 0
    %1342 = vmatprep.subr.mxu0 0.0
    %1343 = vmatpush1.msra.mxu0 0.0
    %1344 = vmatprep.subr.mxu0 0.0
    %1345 = vmatpush1.msra.mxu0 0.0
    %1346 = vmatprep.subr.mxu0 0.0
    %1347 = vmatpush1.msra.mxu0 0.0
    %1348 = vmatprep.subr.mxu0 0.0
    %1349 = vmatpush1.msra.mxu0 0.0
    %1350 = vmatprep.subr.mxu0 0.0
    %1351 = vmatpush1.msra.mxu0 0.0
    %1352 = vmatprep.subr.mxu0 0.0
    %1353 = vmatpush1.msra.mxu0 0.0
    %1354 = vmatprep.subr.mxu0 0.0
    %1355 = vmatpush1.msra.mxu0 0.0
    %1356 = vmatprep.subr.mxu0 0.0
    %1357 = vmatpush1.msra.mxu0 0.0
    %1358 = vmatprep.subr.mxu0 0.0
    %1359 = vmatpush1.msra.mxu0 0.0
    %1360 = vmatprep.subr.mxu0 0.0
    %1361 = vmatpush1.msra.mxu0 0.0
    %1362 = vmatprep.subr.mxu0 0.0
    %1363 = vmatpush1.msra.mxu0 0.0
    %1364 = vmatprep.subr.mxu0 0.0
    %1365 = vmatpush1.msra.mxu0 0.0
    %1366 = vmatprep.subr.mxu0 0.0
    %1367 = vmatpush1.msra.mxu0 0.0
    %1368 = vmatprep.subr.mxu0 0.0
    %1369 = vmatpush1.msra.mxu0 0.0
    %1370 = vmatprep.subr.mxu0 0.0
    %1371 = vmatpush1.msra.mxu0 0.0
    %1372 = vmatprep.subr.mxu0 0.0
    %1373 = vmatpush1.msra.mxu0 %v1337
    %1374 = vmatprep.subr.mxu0 0.0
    %1375 = vmatpush2.msra.mxu0 0.0
    %1376 = vmatprep.subr.mxu0 0.0
    %1377 = vmatpush2.msra.mxu0 0.0
    %1378 = vmatprep.subr.mxu0 0.0
    %1379 = vmatpush2.msra.mxu0 0.0
    %1380 = vmatprep.subr.mxu0 0.0
    %1381 = vmatpush2.msra.mxu0 0.0
    %1382 = vmatprep.subr.mxu0 0.0
    %1383 = vmatpush2.msra.mxu0 0.0
    %1384 = vmatprep.subr.mxu0 0.0
    %1385 = vmatpush2.msra.mxu0 0.0
    %1386 = vmatprep.subr.mxu0 0.0
    %1387 = vmatpush2.msra.mxu0 0.0
    %1388 = vmatprep.subr.mxu0 0.0
    %1389 = vmatpush2.msra.mxu0 0.0
    %1390 = vmatprep.subr.mxu0 0.0
    %1391 = vmatpush2.msra.mxu0 0.0
    %1392 = vmatprep.subr.mxu0 0.0
    %1393 = vmatpush2.msra.mxu0 0.0
    %1394 = vmatprep.subr.mxu0 0.0
    %1395 = vmatpush2.msra.mxu0 0.0
    %1396 = vmatprep.subr.mxu0 0.0
    %1397 = vmatpush2.msra.mxu0 0.0
    %1398 = vmatprep.subr.mxu0 0.0
    %1399 = vmatpush2.msra.mxu0 0.0
    %1400 = vmatprep.subr.mxu0 0.0
    %1401 = vmatpush2.msra.mxu0 0.0
    %1402 = vmatprep.subr.mxu0 0.0
    %1403 = vmatpush2.msra.mxu0 0.0
    %1404 = vmatprep.subr.mxu0 0.0
    %1405 = vmatpush2.msra.mxu0 0.0
    %1406 = vmatprep.mubr.f32.mxu0 0.0
    %1407 = vmatmul.mubr.f32.gmra.mxu0 %v1340
    %v1408 = vpop.f32.mrf.mxu0
    %v1409 = vadd.f32 0.0, %v1408
    %v1410 = vpop.f32.mrf.mxu0
    %1411 = vdwg.mxu0
    %1412 = vrot.lane.b32.xlu0 %v254, 112
    %v1413 = vpop.permute.xlu0 %1412
    %v1416 = vsel %vm261, %v954, 0
    %1418 = vmatprep.subr.mxu0 0.0
    %1419 = vmatpush1.msra.mxu0 0.0
    %1420 = vmatprep.subr.mxu0 0.0
    %1421 = vmatpush1.msra.mxu0 0.0
    %1422 = vmatprep.subr.mxu0 0.0
    %1423 = vmatpush1.msra.mxu0 0.0
    %1424 = vmatprep.subr.mxu0 0.0
    %1425 = vmatpush1.msra.mxu0 0.0
    %1426 = vmatprep.subr.mxu0 0.0
    %1427 = vmatpush1.msra.mxu0 0.0
    %1428 = vmatprep.subr.mxu0 0.0
    %1429 = vmatpush1.msra.mxu0 0.0
    %1430 = vmatprep.subr.mxu0 0.0
    %1431 = vmatpush1.msra.mxu0 0.0
    %1432 = vmatprep.subr.mxu0 0.0
    %1433 = vmatpush1.msra.mxu0 0.0
    %1434 = vmatprep.subr.mxu0 0.0
    %1435 = vmatpush1.msra.mxu0 0.0
    %1436 = vmatprep.subr.mxu0 0.0
    %1437 = vmatpush1.msra.mxu0 0.0
    %1438 = vmatprep.subr.mxu0 0.0
    %1439 = vmatpush1.msra.mxu0 0.0
    %1440 = vmatprep.subr.mxu0 0.0
    %1441 = vmatpush1.msra.mxu0 0.0
    %1442 = vmatprep.subr.mxu0 0.0
    %1443 = vmatpush1.msra.mxu0 0.0
    %1444 = vmatprep.subr.mxu0 0.0
    %1445 = vmatpush1.msra.mxu0 0.0
    %1446 = vmatprep.subr.mxu0 0.0
    %1447 = vmatpush1.msra.mxu0 0.0
    %1448 = vmatprep.subr.mxu0 0.0
    %1449 = vmatpush1.msra.mxu0 %v1413
    %1450 = vmatprep.subr.mxu0 0.0
    %1451 = vmatpush2.msra.mxu0 0.0
    %1452 = vmatprep.subr.mxu0 0.0
    %1453 = vmatpush2.msra.mxu0 0.0
    %1454 = vmatprep.subr.mxu0 0.0
    %1455 = vmatpush2.msra.mxu0 0.0
    %1456 = vmatprep.subr.mxu0 0.0
    %1457 = vmatpush2.msra.mxu0 0.0
    %1458 = vmatprep.subr.mxu0 0.0
    %1459 = vmatpush2.msra.mxu0 0.0
    %1460 = vmatprep.subr.mxu0 0.0
    %1461 = vmatpush2.msra.mxu0 0.0
    %1462 = vmatprep.subr.mxu0 0.0
    %1463 = vmatpush2.msra.mxu0 0.0
    %1464 = vmatprep.subr.mxu0 0.0
    %1465 = vmatpush2.msra.mxu0 0.0
    %1466 = vmatprep.subr.mxu0 0.0
    %1467 = vmatpush2.msra.mxu0 0.0
    %1468 = vmatprep.subr.mxu0 0.0
    %1469 = vmatpush2.msra.mxu0 0.0
    %1470 = vmatprep.subr.mxu0 0.0
    %1471 = vmatpush2.msra.mxu0 0.0
    %1472 = vmatprep.subr.mxu0 0.0
    %1473 = vmatpush2.msra.mxu0 0.0
    %1474 = vmatprep.subr.mxu0 0.0
    %1475 = vmatpush2.msra.mxu0 0.0
    %1476 = vmatprep.subr.mxu0 0.0
    %1477 = vmatpush2.msra.mxu0 0.0
    %1478 = vmatprep.subr.mxu0 0.0
    %1479 = vmatpush2.msra.mxu0 0.0
    %1480 = vmatprep.subr.mxu0 0.0
    %1481 = vmatpush2.msra.mxu0 0.0
    %1482 = vmatprep.mubr.f32.mxu0 0.0
    %1483 = vmatmul.mubr.f32.gmra.mxu0 %v1416
    %v1484 = vpop.f32.mrf.mxu0
    %v1485 = vadd.f32 0.0, %v1484
    %v1486 = vpop.f32.mrf.mxu0
    %1487 = vdwg.mxu0
    %1488 = vrot.lane.b32.xlu0 %v258, 112
    %v1489 = vpop.permute.xlu0 %1488
    %v1492 = vsel %vm261, %v955, 0
    %1494 = vmatprep.subr.mxu0 0.0
    %1495 = vmatpush1.msra.mxu0 0.0
    %1496 = vmatprep.subr.mxu0 0.0
    %1497 = vmatpush1.msra.mxu0 0.0
    %1498 = vmatprep.subr.mxu0 0.0
    %1499 = vmatpush1.msra.mxu0 0.0
    %1500 = vmatprep.subr.mxu0 0.0
    %1501 = vmatpush1.msra.mxu0 0.0
    %1502 = vmatprep.subr.mxu0 0.0
    %1503 = vmatpush1.msra.mxu0 0.0
    %1504 = vmatprep.subr.mxu0 0.0
    %1505 = vmatpush1.msra.mxu0 0.0
    %1506 = vmatprep.subr.mxu0 0.0
    %1507 = vmatpush1.msra.mxu0 0.0
    %1508 = vmatprep.subr.mxu0 0.0
    %1509 = vmatpush1.msra.mxu0 0.0
    %1510 = vmatprep.subr.mxu0 0.0
    %1511 = vmatpush1.msra.mxu0 0.0
    %1512 = vmatprep.subr.mxu0 0.0
    %1513 = vmatpush1.msra.mxu0 0.0
    %1514 = vmatprep.subr.mxu0 0.0
    %1515 = vmatpush1.msra.mxu0 0.0
    %1516 = vmatprep.subr.mxu0 0.0
    %1517 = vmatpush1.msra.mxu0 0.0
    %1518 = vmatprep.subr.mxu0 0.0
    %1519 = vmatpush1.msra.mxu0 0.0
    %1520 = vmatprep.subr.mxu0 0.0
    %1521 = vmatpush1.msra.mxu0 0.0
    %1522 = vmatprep.subr.mxu0 0.0
    %1523 = vmatpush1.msra.mxu0 0.0
    %1524 = vmatprep.subr.mxu0 0.0
    %1525 = vmatpush1.msra.mxu0 %v1489
    %1526 = vmatprep.subr.mxu0 0.0
    %1527 = vmatpush2.msra.mxu0 0.0
    %1528 = vmatprep.subr.mxu0 0.0
    %1529 = vmatpush2.msra.mxu0 0.0
    %1530 = vmatprep.subr.mxu0 0.0
    %1531 = vmatpush2.msra.mxu0 0.0
    %1532 = vmatprep.subr.mxu0 0.0
    %1533 = vmatpush2.msra.mxu0 0.0
    %1534 = vmatprep.subr.mxu0 0.0
    %1535 = vmatpush2.msra.mxu0 0.0
    %1536 = vmatprep.subr.mxu0 0.0
    %1537 = vmatpush2.msra.mxu0 0.0
    %1538 = vmatprep.subr.mxu0 0.0
    %1539 = vmatpush2.msra.mxu0 0.0
    %1540 = vmatprep.subr.mxu0 0.0
    %1541 = vmatpush2.msra.mxu0 0.0
    %1542 = vmatprep.subr.mxu0 0.0
    %1543 = vmatpush2.msra.mxu0 0.0
    %1544 = vmatprep.subr.mxu0 0.0
    %1545 = vmatpush2.msra.mxu0 0.0
    %1546 = vmatprep.subr.mxu0 0.0
    %1547 = vmatpush2.msra.mxu0 0.0
    %1548 = vmatprep.subr.mxu0 0.0
    %1549 = vmatpush2.msra.mxu0 0.0
    %1550 = vmatprep.subr.mxu0 0.0
    %1551 = vmatpush2.msra.mxu0 0.0
    %1552 = vmatprep.subr.mxu0 0.0
    %1553 = vmatpush2.msra.mxu0 0.0
    %1554 = vmatprep.subr.mxu0 0.0
    %1555 = vmatpush2.msra.mxu0 0.0
    %1556 = vmatprep.subr.mxu0 0.0
    %1557 = vmatpush2.msra.mxu0 0.0
    %1558 = vmatprep.mubr.f32.mxu0 0.0
    %1559 = vmatmul.mubr.f32.gmra.mxu0 %v1492
    %v1560 = vpop.f32.mrf.mxu0
    %v1561 = vadd.f32 0.0, %v1560
    %v1562 = vpop.f32.mrf.mxu0
    %1563 = vdwg.mxu0
    %v1564 = vpack.c.bf16 %v1029, %v1029
    %v1565 = vpack.c.bf16 %v1105, %v1105
    %v1566 = vpack.c.bf16 %v1181, %v1181
    %v1567 = vpack.c.bf16 %v1257, %v1257
    %v1568 = vpack.c.bf16 %v1333, %v1333
    %v1569 = vpack.c.bf16 %v1409, %v1409
    %v1570 = vpack.c.bf16 %v1485, %v1485
    %v1571 = vpack.c.bf16 %v1561, %v1561
    %v1572 = vld [vmem:[%s5] sm:$0xf]
    %v1573 = vld [vmem:[%s5 + $0x4] sm:$0xf]
    %v1574 = vld [vmem:[%s5 + $0x8] sm:$0xf]
    %v1575 = vld [vmem:[%s5 + $0xc] sm:$0xf]
    %v1576 = vld [vmem:[%s5 + $0x10] sm:$0xf]
    %v1577 = vld [vmem:[%s5 + $0x14] sm:$0xf]
    %v1578 = vld [vmem:[%s5 + $0x18] sm:$0xf]
    %v1579 = vld [vmem:[%s5 + $0x1c] sm:$0xf]
    %v1581 = vsel %vm261, %v1564, 0
    %vm1583 = vcmask 1043456
    %v1585 = vsel %vm1583, %v1572, 0
    %1587 = vmatprep.subr.bf16.mxu0 0
    %1588 = vmatpush1.bf16.msra.mxu0 0
    %1589 = vmatprep.subr.bf16.mxu0 0
    %1590 = vmatpush1.bf16.msra.mxu0 0
    %1591 = vmatprep.subr.bf16.mxu0 0
    %1592 = vmatpush1.bf16.msra.mxu0 0
    %1593 = vmatprep.subr.bf16.mxu0 0
    %1594 = vmatpush1.bf16.msra.mxu0 0
    %1595 = vmatprep.subr.bf16.mxu0 0
    %1596 = vmatpush1.bf16.msra.mxu0 0
    %1597 = vmatprep.subr.bf16.mxu0 0
    %1598 = vmatpush1.bf16.msra.mxu0 0
    %1599 = vmatprep.subr.bf16.mxu0 0
    %1600 = vmatpush1.bf16.msra.mxu0 0
    %1601 = vmatprep.subr.bf16.mxu0 0
    %1602 = vmatpush1.bf16.msra.mxu0 %v1585
    %1603 = vmatprep.subr.bf16.mxu0 0
    %1604 = vmatpush2.bf16.msra.mxu0 0
    %1605 = vmatprep.subr.bf16.mxu0 0
    %1606 = vmatpush2.bf16.msra.mxu0 0
    %1607 = vmatprep.subr.bf16.mxu0 0
    %1608 = vmatpush2.bf16.msra.mxu0 0
    %1609 = vmatprep.subr.bf16.mxu0 0
    %1610 = vmatpush2.bf16.msra.mxu0 0
    %1611 = vmatprep.subr.bf16.mxu0 0
    %1612 = vmatpush2.bf16.msra.mxu0 0
    %1613 = vmatprep.subr.bf16.mxu0 0
    %1614 = vmatpush2.bf16.msra.mxu0 0
    %1615 = vmatprep.subr.bf16.mxu0 0
    %1616 = vmatpush2.bf16.msra.mxu0 0
    %1617 = vmatprep.subr.bf16.mxu0 0
    %1618 = vmatpush2.bf16.msra.mxu0 0
    %1619 = vmatprep.mubr.bf16.mxu0 0
    %1620 = vmatmul.mubr.bf16.gmra.mxu0 %v1581
    %v1621 = vpop.f32.mrf.mxu0
    %v1622 = vadd.f32 0.0, %v1621
    %v1623 = vpop.f32.mrf.mxu0
    %v1624 = vpop.f32.mrf.mxu0
    %v1625 = vpop.f32.mrf.mxu0
    %1626 = vdwg.mxu0
    %v1628 = vsel %vm261, %v1565, 0
    %v1631 = vsel %vm1583, %v1573, 0
    %1633 = vmatprep.subr.bf16.mxu0 0
    %1634 = vmatpush1.bf16.msra.mxu0 0
    %1635 = vmatprep.subr.bf16.mxu0 0
    %1636 = vmatpush1.bf16.msra.mxu0 0
    %1637 = vmatprep.subr.bf16.mxu0 0
    %1638 = vmatpush1.bf16.msra.mxu0 0
    %1639 = vmatprep.subr.bf16.mxu0 0
    %1640 = vmatpush1.bf16.msra.mxu0 0
    %1641 = vmatprep.subr.bf16.mxu0 0
    %1642 = vmatpush1.bf16.msra.mxu0 0
    %1643 = vmatprep.subr.bf16.mxu0 0
    %1644 = vmatpush1.bf16.msra.mxu0 0
    %1645 = vmatprep.subr.bf16.mxu0 0
    %1646 = vmatpush1.bf16.msra.mxu0 0
    %1647 = vmatprep.subr.bf16.mxu0 0
    %1648 = vmatpush1.bf16.msra.mxu0 %v1631
    %1649 = vmatprep.subr.bf16.mxu0 0
    %1650 = vmatpush2.bf16.msra.mxu0 0
    %1651 = vmatprep.subr.bf16.mxu0 0
    %1652 = vmatpush2.bf16.msra.mxu0 0
    %1653 = vmatprep.subr.bf16.mxu0 0
    %1654 = vmatpush2.bf16.msra.mxu0 0
    %1655 = vmatprep.subr.bf16.mxu0 0
    %1656 = vmatpush2.bf16.msra.mxu0 0
    %1657 = vmatprep.subr.bf16.mxu0 0
    %1658 = vmatpush2.bf16.msra.mxu0 0
    %1659 = vmatprep.subr.bf16.mxu0 0
    %1660 = vmatpush2.bf16.msra.mxu0 0
    %1661 = vmatprep.subr.bf16.mxu0 0
    %1662 = vmatpush2.bf16.msra.mxu0 0
    %1663 = vmatprep.subr.bf16.mxu0 0
    %1664 = vmatpush2.bf16.msra.mxu0 0
    %1665 = vmatprep.mubr.bf16.mxu0 0
    %1666 = vmatmul.mubr.bf16.gmra.mxu0 %v1628
    %v1667 = vpop.f32.mrf.mxu0
    %v1668 = vadd.f32 0.0, %v1667
    %v1669 = vpop.f32.mrf.mxu0
    %v1670 = vpop.f32.mrf.mxu0
    %v1671 = vpop.f32.mrf.mxu0
    %1672 = vdwg.mxu0
    %v1674 = vsel %vm261, %v1566, 0
    %v1677 = vsel %vm1583, %v1574, 0
    %1679 = vmatprep.subr.bf16.mxu0 0
    %1680 = vmatpush1.bf16.msra.mxu0 0
    %1681 = vmatprep.subr.bf16.mxu0 0
    %1682 = vmatpush1.bf16.msra.mxu0 0
    %1683 = vmatprep.subr.bf16.mxu0 0
    %1684 = vmatpush1.bf16.msra.mxu0 0
    %1685 = vmatprep.subr.bf16.mxu0 0
    %1686 = vmatpush1.bf16.msra.mxu0 0
    %1687 = vmatprep.subr.bf16.mxu0 0
    %1688 = vmatpush1.bf16.msra.mxu0 0
    %1689 = vmatprep.subr.bf16.mxu0 0
    %1690 = vmatpush1.bf16.msra.mxu0 0
    %1691 = vmatprep.subr.bf16.mxu0 0
    %1692 = vmatpush1.bf16.msra.mxu0 0
    %1693 = vmatprep.subr.bf16.mxu0 0
    %1694 = vmatpush1.bf16.msra.mxu0 %v1677
    %1695 = vmatprep.subr.bf16.mxu0 0
    %1696 = vmatpush2.bf16.msra.mxu0 0
    %1697 = vmatprep.subr.bf16.mxu0 0
    %1698 = vmatpush2.bf16.msra.mxu0 0
    %1699 = vmatprep.subr.bf16.mxu0 0
    %1700 = vmatpush2.bf16.msra.mxu0 0
    %1701 = vmatprep.subr.bf16.mxu0 0
    %1702 = vmatpush2.bf16.msra.mxu0 0
    %1703 = vmatprep.subr.bf16.mxu0 0
    %1704 = vmatpush2.bf16.msra.mxu0 0
    %1705 = vmatprep.subr.bf16.mxu0 0
    %1706 = vmatpush2.bf16.msra.mxu0 0
    %1707 = vmatprep.subr.bf16.mxu0 0
    %1708 = vmatpush2.bf16.msra.mxu0 0
    %1709 = vmatprep.subr.bf16.mxu0 0
    %1710 = vmatpush2.bf16.msra.mxu0 0
    %1711 = vmatprep.mubr.bf16.mxu0 0
    %1712 = vmatmul.mubr.bf16.gmra.mxu0 %v1674
    %v1713 = vpop.f32.mrf.mxu0
    %v1714 = vadd.f32 0.0, %v1713
    %v1715 = vpop.f32.mrf.mxu0
    %v1716 = vpop.f32.mrf.mxu0
    %v1717 = vpop.f32.mrf.mxu0
    %1718 = vdwg.mxu0
    %v1720 = vsel %vm261, %v1567, 0
    %v1723 = vsel %vm1583, %v1575, 0
    %1725 = vmatprep.subr.bf16.mxu0 0
    %1726 = vmatpush1.bf16.msra.mxu0 0
    %1727 = vmatprep.subr.bf16.mxu0 0
    %1728 = vmatpush1.bf16.msra.mxu0 0
    %1729 = vmatprep.subr.bf16.mxu0 0
    %1730 = vmatpush1.bf16.msra.mxu0 0
    %1731 = vmatprep.subr.bf16.mxu0 0
    %1732 = vmatpush1.bf16.msra.mxu0 0
    %1733 = vmatprep.subr.bf16.mxu0 0
    %1734 = vmatpush1.bf16.msra.mxu0 0
    %1735 = vmatprep.subr.bf16.mxu0 0
    %1736 = vmatpush1.bf16.msra.mxu0 0
    %1737 = vmatprep.subr.bf16.mxu0 0
    %1738 = vmatpush1.bf16.msra.mxu0 0
    %1739 = vmatprep.subr.bf16.mxu0 0
    %1740 = vmatpush1.bf16.msra.mxu0 %v1723
    %1741 = vmatprep.subr.bf16.mxu0 0
    %1742 = vmatpush2.bf16.msra.mxu0 0
    %1743 = vmatprep.subr.bf16.mxu0 0
    %1744 = vmatpush2.bf16.msra.mxu0 0
    %1745 = vmatprep.subr.bf16.mxu0 0
    %1746 = vmatpush2.bf16.msra.mxu0 0
    %1747 = vmatprep.subr.bf16.mxu0 0
    %1748 = vmatpush2.bf16.msra.mxu0 0
    %1749 = vmatprep.subr.bf16.mxu0 0
    %1750 = vmatpush2.bf16.msra.mxu0 0
    %1751 = vmatprep.subr.bf16.mxu0 0
    %1752 = vmatpush2.bf16.msra.mxu0 0
    %1753 = vmatprep.subr.bf16.mxu0 0
    %1754 = vmatpush2.bf16.msra.mxu0 0
    %1755 = vmatprep.subr.bf16.mxu0 0
    %1756 = vmatpush2.bf16.msra.mxu0 0
    %1757 = vmatprep.mubr.bf16.mxu0 0
    %1758 = vmatmul.mubr.bf16.gmra.mxu0 %v1720
    %v1759 = vpop.f32.mrf.mxu0
    %v1760 = vadd.f32 0.0, %v1759
    %v1761 = vpop.f32.mrf.mxu0
    %v1762 = vpop.f32.mrf.mxu0
    %v1763 = vpop.f32.mrf.mxu0
    %1764 = vdwg.mxu0
    %v1766 = vsel %vm261, %v1568, 0
    %v1769 = vsel %vm1583, %v1576, 0
    %1771 = vmatprep.subr.bf16.mxu0 0
    %1772 = vmatpush1.bf16.msra.mxu0 0
    %1773 = vmatprep.subr.bf16.mxu0 0
    %1774 = vmatpush1.bf16.msra.mxu0 0
    %1775 = vmatprep.subr.bf16.mxu0 0
    %1776 = vmatpush1.bf16.msra.mxu0 0
    %1777 = vmatprep.subr.bf16.mxu0 0
    %1778 = vmatpush1.bf16.msra.mxu0 0
    %1779 = vmatprep.subr.bf16.mxu0 0
    %1780 = vmatpush1.bf16.msra.mxu0 0
    %1781 = vmatprep.subr.bf16.mxu0 0
    %1782 = vmatpush1.bf16.msra.mxu0 0
    %1783 = vmatprep.subr.bf16.mxu0 0
    %1784 = vmatpush1.bf16.msra.mxu0 0
    %1785 = vmatprep.subr.bf16.mxu0 0
    %1786 = vmatpush1.bf16.msra.mxu0 %v1769
    %1787 = vmatprep.subr.bf16.mxu0 0
    %1788 = vmatpush2.bf16.msra.mxu0 0
    %1789 = vmatprep.subr.bf16.mxu0 0
    %1790 = vmatpush2.bf16.msra.mxu0 0
    %1791 = vmatprep.subr.bf16.mxu0 0
    %1792 = vmatpush2.bf16.msra.mxu0 0
    %1793 = vmatprep.subr.bf16.mxu0 0
    %1794 = vmatpush2.bf16.msra.mxu0 0
    %1795 = vmatprep.subr.bf16.mxu0 0
    %1796 = vmatpush2.bf16.msra.mxu0 0
    %1797 = vmatprep.subr.bf16.mxu0 0
    %1798 = vmatpush2.bf16.msra.mxu0 0
    %1799 = vmatprep.subr.bf16.mxu0 0
    %1800 = vmatpush2.bf16.msra.mxu0 0
    %1801 = vmatprep.subr.bf16.mxu0 0
    %1802 = vmatpush2.bf16.msra.mxu0 0
    %1803 = vmatprep.mubr.bf16.mxu0 0
    %1804 = vmatmul.mubr.bf16.gmra.mxu0 %v1766
    %v1805 = vpop.f32.mrf.mxu0
    %v1806 = vadd.f32 0.0, %v1805
    %v1807 = vpop.f32.mrf.mxu0
    %v1808 = vpop.f32.mrf.mxu0
    %v1809 = vpop.f32.mrf.mxu0
    %1810 = vdwg.mxu0
    %v1812 = vsel %vm261, %v1569, 0
    %v1815 = vsel %vm1583, %v1577, 0
    %1817 = vmatprep.subr.bf16.mxu0 0
    %1818 = vmatpush1.bf16.msra.mxu0 0
    %1819 = vmatprep.subr.bf16.mxu0 0
    %1820 = vmatpush1.bf16.msra.mxu0 0
    %1821 = vmatprep.subr.bf16.mxu0 0
    %1822 = vmatpush1.bf16.msra.mxu0 0
    %1823 = vmatprep.subr.bf16.mxu0 0
    %1824 = vmatpush1.bf16.msra.mxu0 0
    %1825 = vmatprep.subr.bf16.mxu0 0
    %1826 = vmatpush1.bf16.msra.mxu0 0
    %1827 = vmatprep.subr.bf16.mxu0 0
    %1828 = vmatpush1.bf16.msra.mxu0 0
    %1829 = vmatprep.subr.bf16.mxu0 0
    %1830 = vmatpush1.bf16.msra.mxu0 0
    %1831 = vmatprep.subr.bf16.mxu0 0
    %1832 = vmatpush1.bf16.msra.mxu0 %v1815
    %1833 = vmatprep.subr.bf16.mxu0 0
    %1834 = vmatpush2.bf16.msra.mxu0 0
    %1835 = vmatprep.subr.bf16.mxu0 0
    %1836 = vmatpush2.bf16.msra.mxu0 0
    %1837 = vmatprep.subr.bf16.mxu0 0
    %1838 = vmatpush2.bf16.msra.mxu0 0
    %1839 = vmatprep.subr.bf16.mxu0 0
    %1840 = vmatpush2.bf16.msra.mxu0 0
    %1841 = vmatprep.subr.bf16.mxu0 0
    %1842 = vmatpush2.bf16.msra.mxu0 0
    %1843 = vmatprep.subr.bf16.mxu0 0
    %1844 = vmatpush2.bf16.msra.mxu0 0
    %1845 = vmatprep.subr.bf16.mxu0 0
    %1846 = vmatpush2.bf16.msra.mxu0 0
    %1847 = vmatprep.subr.bf16.mxu0 0
    %1848 = vmatpush2.bf16.msra.mxu0 0
    %1849 = vmatprep.mubr.bf16.mxu0 0
    %1850 = vmatmul.mubr.bf16.gmra.mxu0 %v1812
    %v1851 = vpop.f32.mrf.mxu0
    %v1852 = vadd.f32 0.0, %v1851
    %v1853 = vpop.f32.mrf.mxu0
    %v1854 = vpop.f32.mrf.mxu0
    %v1855 = vpop.f32.mrf.mxu0
    %1856 = vdwg.mxu0
    %v1858 = vsel %vm261, %v1570, 0
    %v1861 = vsel %vm1583, %v1578, 0
    %1863 = vmatprep.subr.bf16.mxu0 0
    %1864 = vmatpush1.bf16.msra.mxu0 0
    %1865 = vmatprep.subr.bf16.mxu0 0
    %1866 = vmatpush1.bf16.msra.mxu0 0
    %1867 = vmatprep.subr.bf16.mxu0 0
    %1868 = vmatpush1.bf16.msra.mxu0 0
    %1869 = vmatprep.subr.bf16.mxu0 0
    %1870 = vmatpush1.bf16.msra.mxu0 0
    %1871 = vmatprep.subr.bf16.mxu0 0
    %1872 = vmatpush1.bf16.msra.mxu0 0
    %1873 = vmatprep.subr.bf16.mxu0 0
    %1874 = vmatpush1.bf16.msra.mxu0 0
    %1875 = vmatprep.subr.bf16.mxu0 0
    %1876 = vmatpush1.bf16.msra.mxu0 0
    %1877 = vmatprep.subr.bf16.mxu0 0
    %1878 = vmatpush1.bf16.msra.mxu0 %v1861
    %1879 = vmatprep.subr.bf16.mxu0 0
    %1880 = vmatpush2.bf16.msra.mxu0 0
    %1881 = vmatprep.subr.bf16.mxu0 0
    %1882 = vmatpush2.bf16.msra.mxu0 0
    %1883 = vmatprep.subr.bf16.mxu0 0
    %1884 = vmatpush2.bf16.msra.mxu0 0
    %1885 = vmatprep.subr.bf16.mxu0 0
    %1886 = vmatpush2.bf16.msra.mxu0 0
    %1887 = vmatprep.subr.bf16.mxu0 0
    %1888 = vmatpush2.bf16.msra.mxu0 0
    %1889 = vmatprep.subr.bf16.mxu0 0
    %1890 = vmatpush2.bf16.msra.mxu0 0
    %1891 = vmatprep.subr.bf16.mxu0 0
    %1892 = vmatpush2.bf16.msra.mxu0 0
    %1893 = vmatprep.subr.bf16.mxu0 0
    %1894 = vmatpush2.bf16.msra.mxu0 0
    %1895 = vmatprep.mubr.bf16.mxu0 0
    %1896 = vmatmul.mubr.bf16.gmra.mxu0 %v1858
    %v1897 = vpop.f32.mrf.mxu0
    %v1898 = vadd.f32 0.0, %v1897
    %v1899 = vpop.f32.mrf.mxu0
    %v1900 = vpop.f32.mrf.mxu0
    %v1901 = vpop.f32.mrf.mxu0
    %1902 = vdwg.mxu0
    %v1904 = vsel %vm261, %v1571, 0
    %v1907 = vsel %vm1583, %v1579, 0
    %1909 = vmatprep.subr.bf16.mxu0 0
    %1910 = vmatpush1.bf16.msra.mxu0 0
    %1911 = vmatprep.subr.bf16.mxu0 0
    %1912 = vmatpush1.bf16.msra.mxu0 0
    %1913 = vmatprep.subr.bf16.mxu0 0
    %1914 = vmatpush1.bf16.msra.mxu0 0
    %1915 = vmatprep.subr.bf16.mxu0 0
    %1916 = vmatpush1.bf16.msra.mxu0 0
    %1917 = vmatprep.subr.bf16.mxu0 0
    %1918 = vmatpush1.bf16.msra.mxu0 0
    %1919 = vmatprep.subr.bf16.mxu0 0
    %1920 = vmatpush1.bf16.msra.mxu0 0
    %1921 = vmatprep.subr.bf16.mxu0 0
    %1922 = vmatpush1.bf16.msra.mxu0 0
    %1923 = vmatprep.subr.bf16.mxu0 0
    %1924 = vmatpush1.bf16.msra.mxu0 %v1907
    %1925 = vmatprep.subr.bf16.mxu0 0
    %1926 = vmatpush2.bf16.msra.mxu0 0
    %1927 = vmatprep.subr.bf16.mxu0 0
    %1928 = vmatpush2.bf16.msra.mxu0 0
    %1929 = vmatprep.subr.bf16.mxu0 0
    %1930 = vmatpush2.bf16.msra.mxu0 0
    %1931 = vmatprep.subr.bf16.mxu0 0
    %1932 = vmatpush2.bf16.msra.mxu0 0
    %1933 = vmatprep.subr.bf16.mxu0 0
    %1934 = vmatpush2.bf16.msra.mxu0 0
    %1935 = vmatprep.subr.bf16.mxu0 0
    %1936 = vmatpush2.bf16.msra.mxu0 0
    %1937 = vmatprep.subr.bf16.mxu0 0
    %1938 = vmatpush2.bf16.msra.mxu0 0
    %1939 = vmatprep.subr.bf16.mxu0 0
    %1940 = vmatpush2.bf16.msra.mxu0 0
    %1941 = vmatprep.mubr.bf16.mxu0 0
    %1942 = vmatmul.mubr.bf16.gmra.mxu0 %v1904
    %v1943 = vpop.f32.mrf.mxu0
    %v1944 = vadd.f32 0.0, %v1943
    %v1945 = vpop.f32.mrf.mxu0
    %v1946 = vpop.f32.mrf.mxu0
    %v1947 = vpop.f32.mrf.mxu0
    %1948 = vdwg.mxu0
    %v1949 = vsel %vm131, %v1622, 0.0
    %v1950 = vsel %vm131, %v1668, 0.0
    %v1951 = vadd.f32 %v1949, %v1950
    %v1952 = vsel %vm131, %v1714, 0.0
    %v1953 = vadd.f32 %v1951, %v1952
    %v1954 = vsel %vm131, %v1760, 0.0
    %v1955 = vadd.f32 %v1953, %v1954
    %v1956 = vsel %vm131, %v1806, 0.0
    %v1957 = vsel %vm131, %v1852, 0.0
    %v1958 = vadd.f32 %v1956, %v1957
    %v1959 = vsel %vm131, %v1898, 0.0
    %v1960 = vadd.f32 %v1958, %v1959
    %v1961 = vsel %vm131, %v1944, 0.0
    %v1962 = vadd.f32 %v1960, %v1961
    %v1963 = vld [vmem:[#allocation10] sm:$0x1]
    %v1965 = vlaneseq
    %v1966 = vshrl.u32 %v1965, 7
    %v1967 = vsub.s32 0, %v1966
    %v1968 = vrot.slane %v1963, %v1967
    %v1970 = vadd.f32 %v1955, %v1968
    %v1971 = vadd.f32 %v1962, %v1968
    %v1972 = vadd.f32 %v1970, %v129
    %v1973 = vadd.f32 %v1971, %v130
    %v1974 = vsel %vm131, %v1972, 0.0
    %1975 = vadd.xlane.f32.xlu0 %v1974
    %v1976 = vpop.xlane.xlu0 %1975
    %v1977 = vsel %vm131, %v1973, 0.0
    %1978 = vadd.xlane.f32.xlu0 %v1977
    %v1979 = vpop.xlane.xlu0 %1978
    %v1980 = vmul.f32 %v1976, %v138
    %v1981 = vmul.f32 %v1979, %v138
    %v1982 = vsub.f32 %v1972, %v1980
    %v1983 = vsub.f32 %v1973, %v1981
    %v1984 = vmul.f32 %v1982, %v1982
    %v1985 = vmul.f32 %v1983, %v1983
    %v1986 = vsel %vm131, %v1984, 0.0
    %1987 = vadd.xlane.f32.xlu0 %v1986
    %v1988 = vpop.xlane.xlu0 %1987
    %v1989 = vsel %vm131, %v1985, 0.0
    %1990 = vadd.xlane.f32.xlu0 %v1989
    %v1991 = vpop.xlane.xlu0 %1990
    %v1992 = vmul.f32 %v1988, %v138
    %v1993 = vmul.f32 %v1991, %v138
    %v1994 = vadd.f32 %v1992, 1e-05
    %v1995 = vadd.f32 %v1993, 1e-05
    %v1996 = vrsqrt.pop %v1994
    %v1997 = vrsqrt.pop %v1995
    %v1998 = vmul.f32 %v1982, %v1996
    %v1999 = vmul.f32 %v1983, %v1997
    %v2000 = vld [vmem:[#allocation11] sm:$0x1]
    %v2002 = vlaneseq
    %v2003 = vshrl.u32 %v2002, 7
    %v2004 = vsub.s32 0, %v2003
    %v2005 = vrot.slane %v2000, %v2004
    %v2007 = vmul.f32 %v1998, %v2005
    %v2008 = vmul.f32 %v1999, %v2005
    %v2009 = vld [vmem:[#allocation13] sm:$0x1]
    %v2011 = vlaneseq
    %v2012 = vshrl.u32 %v2011, 7
    %v2013 = vsub.s32 0, %v2012
    %v2014 = vrot.slane %v2009, %v2013
    %v2016 = vadd.f32 %v2007, %v2014
    %v2017 = vadd.f32 %v2008, %v2014
    %v2018 = vpack.c.bf16 %v2017, %v2016
    %v2019 = vld [vmem:[%s9] sm:$0xf]
    %v2020 = vld [vmem:[%s9 + $0x4] sm:$0xf]
    %v2021 = vld [vmem:[%s9 + $0x8] sm:$0xf]
    %v2022 = vld [vmem:[%s9 + $0xc] sm:$0xf]
    %v2023 = vld [vmem:[%s10] sm:$0x1]
    %v2025 = vlaneseq
    %v2026 = vshrl.u32 %v2025, 7
    %v2027 = vsub.s32 0, %v2026
    %v2028 = vrot.slane %v2023, %v2027
    %v2034 = vunpack.c.l.b16 %v2019
    %v2035 = vunpack.c.l.b16 %v2020
    %v2036 = vunpack.c.l.b16 %v2021
    %v2037 = vunpack.c.l.b16 %v2022
    %v2038 = vpack.c.b16 %v2035, %v2034
    %v2039 = vpack.c.b16 %v2037, %v2036
    %v2043 = vsel %vm131, %v2018, 0
    %2045 = vmatprep.subr.bf16.mxu0 0
    %2046 = vmatpush1.bf16.msra.mxu0 0
    %2047 = vmatprep.subr.bf16.mxu0 0
    %2048 = vmatpush1.bf16.msra.mxu0 0
    %2049 = vmatprep.subr.bf16.mxu0 0
    %2050 = vmatpush1.bf16.msra.mxu0 0
    %2051 = vmatprep.subr.bf16.mxu0 0
    %2052 = vmatpush1.bf16.msra.mxu0 0
    %2053 = vmatprep.subr.bf16.mxu0 0
    %2054 = vmatpush1.bf16.msra.mxu0 0
    %2055 = vmatprep.subr.bf16.mxu0 0
    %2056 = vmatpush1.bf16.msra.mxu0 0
    %2057 = vmatprep.subr.bf16.mxu0 0
    %2058 = vmatpush1.bf16.msra.mxu0 %v2039
    %2059 = vmatprep.subr.bf16.mxu0 0
    %2060 = vmatpush1.bf16.msra.mxu0 %v2038
    %2061 = vmatprep.subr.bf16.mxu0 0
    %2062 = vmatpush2.bf16.msra.mxu0 0
    %2063 = vmatprep.subr.bf16.mxu0 0
    %2064 = vmatpush2.bf16.msra.mxu0 0
    %2065 = vmatprep.subr.bf16.mxu0 0
    %2066 = vmatpush2.bf16.msra.mxu0 0
    %2067 = vmatprep.subr.bf16.mxu0 0
    %2068 = vmatpush2.bf16.msra.mxu0 0
    %2069 = vmatprep.subr.bf16.mxu0 0
    %2070 = vmatpush2.bf16.msra.mxu0 0
    %2071 = vmatprep.subr.bf16.mxu0 0
    %2072 = vmatpush2.bf16.msra.mxu0 0
    %2073 = vmatprep.subr.bf16.mxu0 0
    %2074 = vmatpush2.bf16.msra.mxu0 0
    %2075 = vmatprep.subr.bf16.mxu0 0
    %2076 = vmatpush2.bf16.msra.mxu0 0
    %2077 = vmatprep.mubr.bf16.mxu0 0
    %2078 = vmatmul.mubr.bf16.gmra.mxu0 %v2043
    %v2079 = vpop.f32.mrf.mxu0
    %v2080 = vadd.f32 %v2028, %v2079
    %v2081 = vpop.f32.mrf.mxu0
    %v2082 = vpop.f32.mrf.mxu0
    %v2083 = vadd.f32 %v2028, %v2082
    %v2084 = vpop.f32.mrf.mxu0
    %2085 = vdwg.mxu0
    %v2086 = vmax.f32 %v2080, 0.0
    %v2087 = vmax.f32 %v2083, 0.0
    %v2088 = vpack.c.bf16 %v2087, %v2086
    %v2089 = vld [vmem:[%s11] sm:$0xf]
    %v2090 = vld [vmem:[%s11 + $0x4] sm:$0xf]
    %v2091 = vld [vmem:[%s11 + $0x8] sm:$0xf]
    %v2092 = vld [vmem:[%s11 + $0xc] sm:$0xf]
    %v2093 = vld [vmem:[%s11 + $0x10] sm:$0xf]
    %v2094 = vld [vmem:[%s11 + $0x14] sm:$0xf]
    %v2095 = vld [vmem:[%s11 + $0x18] sm:$0xf]
    %v2096 = vld [vmem:[%s11 + $0x1c] sm:$0xf]
    %v2097 = vld [vmem:[%s12] sm:$0x1]
    %v2099 = vlaneseq
    %v2100 = vshrl.u32 %v2099, 7
    %v2101 = vsub.s32 0, %v2100
    %v2102 = vrot.slane %v2097, %v2101
    %v2112 = vunpack.c.l.b16 %v2089
    %v2113 = vunpack.c.l.b16 %v2090
    %v2114 = vunpack.c.l.b16 %v2091
    %v2115 = vunpack.c.l.b16 %v2092
    %v2116 = vunpack.c.l.b16 %v2093
    %v2117 = vunpack.c.l.b16 %v2094
    %v2118 = vunpack.c.l.b16 %v2095
    %v2119 = vunpack.c.l.b16 %v2096
    %v2120 = vpack.c.b16 %v2113, %v2112
    %v2121 = vpack.c.b16 %v2115, %v2114
    %v2122 = vpack.c.b16 %v2117, %v2116
    %v2123 = vpack.c.b16 %v2119, %v2118
    %vm2128 = vcmask 523264
    %v2130 = vsel %vm2128, %v2088, 0
    %2132 = vmatprep.subr.bf16.mxu0 0
    %2133 = vmatpush1.bf16.msra.mxu0 0
    %2134 = vmatprep.subr.bf16.mxu0 0
    %2135 = vmatpush1.bf16.msra.mxu0 0
    %2136 = vmatprep.subr.bf16.mxu0 0
    %2137 = vmatpush1.bf16.msra.mxu0 0
    %2138 = vmatprep.subr.bf16.mxu0 0
    %2139 = vmatpush1.bf16.msra.mxu0 0
    %2140 = vmatprep.subr.bf16.mxu0 0
    %2141 = vmatpush1.bf16.msra.mxu0 %v2123
    %2142 = vmatprep.subr.bf16.mxu0 0
    %2143 = vmatpush1.bf16.msra.mxu0 %v2122
    %2144 = vmatprep.subr.bf16.mxu0 0
    %2145 = vmatpush1.bf16.msra.mxu0 %v2121
    %2146 = vmatprep.subr.bf16.mxu0 0
    %2147 = vmatpush1.bf16.msra.mxu0 %v2120
    %2148 = vmatprep.subr.bf16.mxu0 0
    %2149 = vmatpush2.bf16.msra.mxu0 0
    %2150 = vmatprep.subr.bf16.mxu0 0
    %2151 = vmatpush2.bf16.msra.mxu0 0
    %2152 = vmatprep.subr.bf16.mxu0 0
    %2153 = vmatpush2.bf16.msra.mxu0 0
    %2154 = vmatprep.subr.bf16.mxu0 0
    %2155 = vmatpush2.bf16.msra.mxu0 0
    %2156 = vmatprep.subr.bf16.mxu0 0
    %2157 = vmatpush2.bf16.msra.mxu0 0
    %2158 = vmatprep.subr.bf16.mxu0 0
    %2159 = vmatpush2.bf16.msra.mxu0 0
    %2160 = vmatprep.subr.bf16.mxu0 0
    %2161 = vmatpush2.bf16.msra.mxu0 0
    %2162 = vmatprep.subr.bf16.mxu0 0
    %2163 = vmatpush2.bf16.msra.mxu0 0
    %2164 = vmatprep.mubr.bf16.mxu0 0
    %2165 = vmatmul.mubr.bf16.gmra.mxu0 %v2130
    %v2166 = vpop.f32.mrf.mxu0
    %v2167 = vadd.f32 %v2102, %v2166
    %v2168 = vpop.f32.mrf.mxu0
    %v2169 = vpop.f32.mrf.mxu0
    %v2170 = vadd.f32 %v2102, %v2169
    %v2171 = vpop.f32.mrf.mxu0
    %2172 = vdwg.mxu0
    %v2173 = vmax.f32 %v2167, 0.0
    %v2174 = vmax.f32 %v2170, 0.0
    %v2175 = vadd.f32 %v2173, %v1972
    %v2176 = vadd.f32 %v2174, %v1973
    %2177 = vst.msk [vmem:[#allocation14] sm:$0xff] %vm131, %v2175
    %2178 = vst.msk [vmem:[#allocation14 + $0x8] sm:$0xff] %vm131, %v2176
    // Predicated region
    $region82: #{tpu_custom_call.1} parent=1 // pred_check
      _
    $region83: #{tpu_custom_call.1} parent=1 // pred_check_branch
      %2180 = sbr.rel (0) target = $region85
    $region84: #{tpu_custom_call.1} parent=1 // pred_region
      %s2182 = ssub.s32 256, 256
      %2183 = vsyncadd [#allocation4], %s2182
      %s2184 = sshll.u32 [#allocation14], 4
      %s2185 = int_to_ptr.vmem [resolvable:$true] %s2184
      %2190 = dma.vmem_to_hbm [thread:$0]  %s2185, 256, %s13, [#allocation4], 128, 128, 8
    $region85: #{tpu_custom_call.1} parent=1 // pred_fallthru
      _
    // Predicated region
    $region86: #{tpu_custom_call.1} parent=1 // pred_check
      _
    $region87: #{tpu_custom_call.1} parent=1 // pred_check_branch
      %2192 = sbr.rel (0) target = $region89
    $region88: #{tpu_custom_call.1} parent=1 // pred_region
      %2193 = dma.done [#allocation4], 256
    $region89: #{tpu_custom_call.1} parent=1 // pred_fallthru
      _
    %2194 = vsyncpa [#allocation3], 1
    %2195 = vsyncpa [#allocation6], 1
    %2196 = vsyncpa [#allocation9], 1
    %2197 = vsyncpa [#allocation12], 1
    %2198 = vsyncpa [#allocation4], 1

</llo_original>
